<compile_context>
chip_gen: v7x
topology: tpu7x:2x2x1
jax: 0.10.0
libtpu: 0.0.40
codegen_flags: <defaults>
</compile_context>

<pallas_src>
import math
from functools import partial

import jax
import jax.numpy as jnp
from jax import lax
from jax.experimental import pallas as pl
from jax.experimental.pallas import tpu as pltpu

MAXITER = 100          # matches PyTorch maxIter
N_POWER_ITERS = 40     # power-iteration steps for the Lipschitz constant
L_EPS = 1e-6           # clamp for fully-masked (degenerate) groups


# --------------------------------------------------------------------------
# In-kernel helpers (traced JAX, shared by both passes)
# --------------------------------------------------------------------------

def _dty(d, m2, ysig):
    """DtY[k, g] = sum_t D[t,k] * m2[t,g] * ysig[t,g]   -> (K, Gb)."""
    return lax.dot_general(d, m2 * ysig, (((0,), (0,)), ((), ())),
                           preferred_element_type=jnp.float32)


def _power_iter_linv(d, m2):
    """1 / lambda_max(D^T diag(m2_g) D) per group column g -> (1, Gb)."""
    K = d.shape[1]
    gb = m2.shape[1]

    def matvec(v):
        z = jnp.dot(d, v, preferred_element_type=jnp.float32)            # (T, Gb)
        return lax.dot_general(d, m2 * z, (((0,), (0,)), ((), ())),
                               preferred_element_type=jnp.float32)       # (K, Gb)

    def body(_, v):
        av = matvec(v)
        nrm = jnp.sqrt(jnp.sum(av * av, axis=0, keepdims=True))          # (1, Gb)
        return av / jnp.maximum(nrm, 1e-30)

    v = lax.fori_loop(0, N_POWER_ITERS, body,
                      jnp.ones((K, gb), jnp.float32))
    av = matvec(v)
    lam_max = (jnp.sum(v * av, axis=0, keepdims=True) /
               jnp.maximum(jnp.sum(v * v, axis=0, keepdims=True), 1e-30))
    lam_max = jnp.maximum(lam_max, L_EPS)          # guard fully-masked groups
    return 1.0 / lam_max                           # (1, Gb)


def _fista_loop(d, m_linv, cminus, cplus):
    """Run MAXITER FISTA iterations; state laid out (K, Gb), G in lanes."""
    x0 = jnp.zeros_like(cminus)

    def body(_, carry):
        x_old, y_old, t_old = carry
        # (I - Linv*DtD) y  ==  y - D^T( (m^2*Linv) * (D y) )   -- two MXU matmuls
        z = jnp.dot(d, y_old, preferred_element_type=jnp.float32)        # (T, Gb)
        dtdy = lax.dot_general(d, m_linv * z, (((0,), (0,)), ((), ())),
                               preferred_element_type=jnp.float32)       # (K, Gb)
        ay = y_old - dtdy
        x_new = jnp.maximum(ay + cminus, 0.0) + jnp.minimum(ay + cplus, 0.0)
        t_new = (1.0 + jnp.sqrt(1.0 + 4.0 * t_old * t_old)) * 0.5
        tt = (t_old - 1.0) / t_new
        y_new = x_new + tt * (x_new - x_old)
        return x_new, y_new, t_new

    x_fin, _, _ = lax.fori_loop(0, MAXITER, body, (x0, x0, jnp.float32(1.0)))
    return x_fin


# --------------------------------------------------------------------------
# Pallas kernels (one grid step = one block of groups)
# --------------------------------------------------------------------------

def _make_pass1_kernel(lam):
    lam = float(lam)

    def kernel(d_ref, m2_ref, ysig_ref, x_ref, linv_ref):
        d = d_ref[...]                                  # (T, K)   shared dict
        m2 = m2_ref[...]                                # (T, Gb)  mask^2
        ysig = ysig_ref[...]                            # (T, Gb)  signal
        linv = _power_iter_linv(d, m2)                  # (1, Gb)
        b = _dty(d, m2, ysig) * linv                    # (K, Gb)
        wl = lam * linv                                 # pass-1 weights == 1
        x_ref[...] = _fista_loop(d, m2 * linv, b - wl, b + wl)
        linv_ref[...] = linv

    return kernel


def _make_pass2_kernel(lam):
    lam = float(lam)

    def kernel(d_ref, m2_ref, ysig_ref, w_ref, linv_ref, x_ref, rec_ref):
        d = d_ref[...]                                  # (T, K)
        m2 = m2_ref[...]                                # (T, Gb)
        ysig = ysig_ref[...]                            # (T, Gb)
        w = w_ref[...]                                  # (K, Gb) re-weighted
        linv = linv_ref[...]                            # (1, Gb) from pass 1
        b = _dty(d, m2, ysig) * linv
        wl = w * (lam * linv)
        x = _fista_loop(d, m2 * linv, b - wl, b + wl)
        x_ref[...] = x
        # fused reconstruction with the *unmasked* dictionary
        rec_ref[...] = jnp.dot(d, x, preferred_element_type=jnp.float32)  # (T, Gb)

    return kernel


def _fista_pass1(d, m2_t, y_t, lam, gb):
    T, K = d.shape
    g_pad = m2_t.shape[1]
    return pl.pallas_call(
        _make_pass1_kernel(lam),
        out_shape=(jax.ShapeDtypeStruct((K, g_pad), jnp.float32),
                   jax.ShapeDtypeStruct((1, g_pad), jnp.float32)),
        grid=(g_pad // gb,),
        in_specs=[pl.BlockSpec((T, K), lambda g: (0, 0)),
                  pl.BlockSpec((T, gb), lambda g: (0, g)),
                  pl.BlockSpec((T, gb), lambda g: (0, g))],
        out_specs=[pl.BlockSpec((K, gb), lambda g: (0, g)),
                   pl.BlockSpec((1, gb), lambda g: (0, g))],
        compiler_params=pltpu.CompilerParams(
            dimension_semantics=("parallel",)),
    )(d, m2_t, y_t)


def _fista_pass2(d, m2_t, y_t, w_t, linv_t, lam, gb):
    T, K = d.shape
    g_pad = m2_t.shape[1]
    return pl.pallas_call(
        _make_pass2_kernel(lam),
        out_shape=(jax.ShapeDtypeStruct((K, g_pad), jnp.float32),
                   jax.ShapeDtypeStruct((T, g_pad), jnp.float32)),
        grid=(g_pad // gb,),
        in_specs=[pl.BlockSpec((T, K), lambda g: (0, 0)),
                  pl.BlockSpec((T, gb), lambda g: (0, g)),
                  pl.BlockSpec((T, gb), lambda g: (0, g)),
                  pl.BlockSpec((K, gb), lambda g: (0, g)),
                  pl.BlockSpec((1, gb), lambda g: (0, g))],
        out_specs=[pl.BlockSpec((K, gb), lambda g: (0, g)),
                   pl.BlockSpec((T, gb), lambda g: (0, g))],
        compiler_params=pltpu.CompilerParams(
            dimension_semantics=("parallel",)),
    )(d, m2_t, y_t, w_t, linv_t)


# --------------------------------------------------------------------------
# Wrapper (mirrors MaskDyanEncoder.forward, 4-D branch)
# --------------------------------------------------------------------------

def creat_real_dictionary(T, rr, theta):
    i = jnp.arange(T, dtype=jnp.float32)[:, None]                  # (T, 1)
    pw = rr[None, :] ** i                                          # (T, N)
    W1 = pw * jnp.cos(i * theta[None, :])
    W2 = pw * jnp.sin(i * theta[None, :])
    return jnp.concatenate(
        [jnp.ones((T, 1), jnp.float32), W1, W2], axis=1)           # (T, 2N+1)


@partial(jax.jit, static_argnums=(2, 4))
def mask_dyan_encoder_forward(rr, theta, lam, x, T, M):
    """Mirrors MaskDyanEncoder.forward for 4-D x of shape (B, T, J, 1)."""
    B, Tx, J, C = x.shape
    assert Tx == T and C == 1
    dic = creat_real_dictionary(T, rr, theta).astype(jnp.float32)  # (T, K)
    K = dic.shape[1]
    G = B * J

    # group-as-lane layout: column g = b*J + j
    y_t = jnp.transpose(x[..., 0], (1, 0, 2)).reshape(T, G)        # (T, G)
    m_t = jnp.transpose(M[..., 0], (1, 0, 2)).reshape(T, G)
    m2_t = m_t * m_t          # exact for arbitrary masks (== m for binary)

    # pad the group axis to a lane-aligned block size
    g_pad = ((G + 127) // 128) * 128
    gb = 256 if g_pad % 256 == 0 else 128
    pad = g_pad - G
    y_p = jnp.pad(y_t, ((0, 0), (0, pad)))
    m2_p = jnp.pad(m2_t, ((0, 0), (0, pad)))

    # Pass 1: Wc == ones (weights baked into the kernel as lam * Linv)
    x1_p, linv_p = _fista_pass1(dic, m2_p, y_p, lam, gb)
    x1 = x1_p[:, :G]                                               # (K, G)

    # Global re-weighting (fista_reweighted_mask_wc_batch, 2nd loop iteration).
    # Uses a norm over *all real groups*, so it must live at the wrapper level.
    w_raw = 1.0 / (jnp.abs(x1) + 0.01)                             # (K, G)
    w2 = w_raw / jnp.linalg.norm(w_raw) * (K * T)
    w2_p = jnp.pad(w2, ((0, 0), (0, pad)), constant_values=1.0)

    # Pass 2 + fused reconstruction with the unmasked dictionary
    x2_p, rec_p = _fista_pass2(dic, m2_p, y_p, w2_p, linv_p, lam, gb)
    x2 = x2_p[:, :G]                                               # (K, G)
    rec = rec_p[:, :G]                                             # (T, G)

    sparse_code = jnp.transpose(x2.reshape(K, B, J), (1, 0, 2))    # (B, K, J)
    reconst_out = jnp.transpose(rec.reshape(T, B, J), (1, 2, 0))[..., None]  # (B,J,T,1)
    # dic averaged over its identical broadcast copies == dic itself
    return sparse_code, dic, reconst_out


# --------------------------------------------------------------------------

if __name__ == "__main__":
    B, T, J, N = 2, 8, 4, 8          # K = 2N + 1 = 17 dictionary atoms
    lam = 0.1

    key = jax.random.PRNGKey(0)
    k1, k2, k3, k4 = jax.random.split(key, 4)
    Drr = jax.random.uniform(k1, (N,), jnp.float32, 0.8, 1.0)
    Dtheta = jax.random.uniform(k2, (N,), jnp.float32, 0.0, math.pi)
    x = jax.random.normal(k3, (B, T, J, 1), jnp.float32)
    M = (jax.random.uniform(k4, (B, T, J, 1)) > 0.25).astype(jnp.float32)
    M = M.at[:, 0].set(1.0)          # keep at least one visible frame per group

    sparse_code, dic, rec = mask_dyan_encoder_forward(Drr, Dtheta, lam, x, T, M)
    jax.block_until_ready((sparse_code, dic, rec))

    assert sparse_code.shape == (B, 2 * N + 1, J)
    assert dic.shape == (T, 2 * N + 1)
    assert rec.shape == (B, J, T, 1)
    assert bool(jnp.all(jnp.isfinite(sparse_code)))
    assert bool(jnp.all(jnp.isfinite(rec)))
    print("KERNEL_OK")
</pallas_src>

<mosaic_0001>
module attributes {stable_mosaic.version = 11 : i64} {
  func.func @kernel(%arg0: i32, %arg1: memref<8x17xf32, #tpu.memory_space<vmem>>, %arg2: memref<8x128xf32, #tpu.memory_space<vmem>>, %arg3: memref<8x128xf32, #tpu.memory_space<vmem>>, %arg4: memref<17x128xf32, #tpu.memory_space<vmem>>, %arg5: memref<1x128xf32, #tpu.memory_space<vmem>>) attributes {dimension_semantics = [#tpu.dimension_semantics<parallel>], iteration_bounds = array<i64: 1>, scalar_prefetch = 0 : i64, scratch_operands = 0 : i64, tpu.core_type = #tpu.core_type<tc>, window_params = [{pipeline_mode = #tpu.pipeline_mode<synchronous>, transform_indices = @transform_0, window_bounds = array<i64: 8, 17>}, {transform_indices = @transform_1, window_bounds = array<i64: 8, 128>}, {transform_indices = @transform_2, window_bounds = array<i64: 8, 128>}, {transform_indices = @transform_3, window_bounds = array<i64: 17, 128>}, {transform_indices = @transform_4, window_bounds = array<i64: 1, 128>}]} {
    %c0 = arith.constant 0 : index
    %c0_0 = arith.constant 0 : index
    %0 = vector.load %arg1[%c0, %c0_0] : memref<8x17xf32, #tpu.memory_space<vmem>>, vector<8x17xf32>
    %c0_1 = arith.constant 0 : index
    %c0_2 = arith.constant 0 : index
    %1 = vector.load %arg2[%c0_1, %c0_2] : memref<8x128xf32, #tpu.memory_space<vmem>>, vector<8x128xf32>
    %c0_3 = arith.constant 0 : index
    %c0_4 = arith.constant 0 : index
    %2 = vector.load %arg3[%c0_3, %c0_4] : memref<8x128xf32, #tpu.memory_space<vmem>>, vector<8x128xf32>
    %cst = arith.constant 1.000000e+00 : f32
    %3 = vector.broadcast %cst : f32 to vector<17x128xf32>
    %c0_i32 = arith.constant 0 : i32
    %c40_i32 = arith.constant 40 : i32
    %4 = arith.addi %c0_i32, %c40_i32 : i32
    %c1_i32 = arith.constant 1 : i32
    %5 = scf.for %arg6 = %c0_i32 to %4 step %c1_i32 iter_args(%arg7 = %3) -> (vector<17x128xf32>)  : i32 {
      %cst_22 = arith.constant dense<0.000000e+00> : vector<8x128xf32>
      %39 = tpu.matmul %0, %arg7, %cst_22 {dimension_numbers = #tpu.dot_dimension_numbers<[1], [0], [0], [1], [0, 0, 1, 1], [], []>} : vector<8x17xf32>, vector<17x128xf32>, vector<8x128xf32> -> vector<8x128xf32>
      %40 = arith.mulf %1, %39 : vector<8x128xf32>
      %cst_23 = arith.constant dense<0.000000e+00> : vector<17x128xf32>
      %41 = tpu.matmul %0, %40, %cst_23 {dimension_numbers = #tpu.dot_dimension_numbers<[0], [0], [1], [1], [0, 1, 1, 1], [], []>} : vector<8x17xf32>, vector<8x128xf32>, vector<17x128xf32> -> vector<17x128xf32>
      %42 = arith.mulf %41, %41 : vector<17x128xf32>
      %cst_24 = arith.constant dense<0.000000e+00> : vector<128xf32>
      %43 = vector.multi_reduction <add>, %42, %cst_24 [0] : vector<17x128xf32> to vector<128xf32>
      %44 = vector.shape_cast %43 : vector<128xf32> to vector<1x128xf32>
      %45 = math.sqrt %44 : vector<1x128xf32>
      %cst_25 = arith.constant 1.000000e-30 : f32
      %46 = vector.broadcast %cst_25 : f32 to vector<1x128xf32>
      %47 = arith.maximumf %45, %46 : vector<1x128xf32>
      %48 = vector.broadcast %47 : vector<1x128xf32> to vector<17x128xf32>
      %49 = arith.divf %41, %48 : vector<17x128xf32>
      scf.yield %49 : vector<17x128xf32>
    }
    %cst_5 = arith.constant dense<0.000000e+00> : vector<8x128xf32>
    %6 = tpu.matmul %0, %5, %cst_5 {dimension_numbers = #tpu.dot_dimension_numbers<[1], [0], [0], [1], [0, 0, 1, 1], [], []>} : vector<8x17xf32>, vector<17x128xf32>, vector<8x128xf32> -> vector<8x128xf32>
    %7 = arith.mulf %1, %6 : vector<8x128xf32>
    %cst_6 = arith.constant dense<0.000000e+00> : vector<17x128xf32>
    %8 = tpu.matmul %0, %7, %cst_6 {dimension_numbers = #tpu.dot_dimension_numbers<[0], [0], [1], [1], [0, 1, 1, 1], [], []>} : vector<8x17xf32>, vector<8x128xf32>, vector<17x128xf32> -> vector<17x128xf32>
    %9 = arith.mulf %5, %8 : vector<17x128xf32>
    %cst_7 = arith.constant dense<0.000000e+00> : vector<128xf32>
    %10 = vector.multi_reduction <add>, %9, %cst_7 [0] : vector<17x128xf32> to vector<128xf32>
    %11 = vector.shape_cast %10 : vector<128xf32> to vector<1x128xf32>
    %12 = arith.mulf %5, %5 : vector<17x128xf32>
    %cst_8 = arith.constant dense<0.000000e+00> : vector<128xf32>
    %13 = vector.multi_reduction <add>, %12, %cst_8 [0] : vector<17x128xf32> to vector<128xf32>
    %14 = vector.shape_cast %13 : vector<128xf32> to vector<1x128xf32>
    %cst_9 = arith.constant 1.000000e-30 : f32
    %15 = vector.broadcast %cst_9 : f32 to vector<1x128xf32>
    %16 = arith.maximumf %14, %15 : vector<1x128xf32>
    %17 = arith.divf %11, %16 : vector<1x128xf32>
    %cst_10 = arith.constant 9.99999997E-7 : f32
    %18 = vector.broadcast %cst_10 : f32 to vector<1x128xf32>
    %19 = arith.maximumf %17, %18 : vector<1x128xf32>
    %cst_11 = arith.constant 1.000000e+00 : f32
    %20 = vector.broadcast %cst_11 : f32 to vector<1x128xf32>
    %21 = arith.divf %20, %19 : vector<1x128xf32>
    %22 = arith.mulf %1, %2 : vector<8x128xf32>
    %cst_12 = arith.constant dense<0.000000e+00> : vector<17x128xf32>
    %23 = tpu.matmul %0, %22, %cst_12 {dimension_numbers = #tpu.dot_dimension_numbers<[0], [0], [1], [1], [0, 1, 1, 1], [], []>} : vector<8x17xf32>, vector<8x128xf32>, vector<17x128xf32> -> vector<17x128xf32>
    %24 = vector.broadcast %21 : vector<1x128xf32> to vector<17x128xf32>
    %25 = arith.mulf %23, %24 : vector<17x128xf32>
    %cst_13 = arith.constant 1.000000e-01 : f32
    %26 = vector.broadcast %cst_13 : f32 to vector<1x128xf32>
    %27 = arith.mulf %26, %21 : vector<1x128xf32>
    %28 = vector.broadcast %21 : vector<1x128xf32> to vector<8x128xf32>
    %29 = arith.mulf %1, %28 : vector<8x128xf32>
    %30 = vector.broadcast %27 : vector<1x128xf32> to vector<17x128xf32>
    %31 = arith.subf %25, %30 : vector<17x128xf32>
    %32 = vector.broadcast %27 : vector<1x128xf32> to vector<17x128xf32>
    %33 = arith.addf %25, %32 : vector<17x128xf32>
    %cst_14 = arith.constant 0.000000e+00 : f32
    %34 = vector.broadcast %cst_14 : f32 to vector<17x128xf32>
    %cst_15 = arith.constant 1.000000e+00 : f32
    %c0_i32_16 = arith.constant 0 : i32
    %c100_i32 = arith.constant 100 : i32
    %35 = arith.addi %c0_i32_16, %c100_i32 : i32
    %c1_i32_17 = arith.constant 1 : i32
    %36:3 = scf.for %arg6 = %c0_i32_16 to %35 step %c1_i32_17 iter_args(%arg7 = %34, %arg8 = %34, %arg9 = %cst_15) -> (vector<17x128xf32>, vector<17x128xf32>, f32)  : i32 {
      %cst_22 = arith.constant dense<0.000000e+00> : vector<8x128xf32>
      %39 = tpu.matmul %0, %arg8, %cst_22 {dimension_numbers = #tpu.dot_dimension_numbers<[1], [0], [0], [1], [0, 0, 1, 1], [], []>} : vector<8x17xf32>, vector<17x128xf32>, vector<8x128xf32> -> vector<8x128xf32>
      %40 = arith.mulf %29, %39 : vector<8x128xf32>
      %cst_23 = arith.constant dense<0.000000e+00> : vector<17x128xf32>
      %41 = tpu.matmul %0, %40, %cst_23 {dimension_numbers = #tpu.dot_dimension_numbers<[0], [0], [1], [1], [0, 1, 1, 1], [], []>} : vector<8x17xf32>, vector<8x128xf32>, vector<17x128xf32> -> vector<17x128xf32>
      %42 = arith.subf %arg8, %41 : vector<17x128xf32>
      %43 = arith.addf %42, %31 : vector<17x128xf32>
      %cst_24 = arith.constant 0.000000e+00 : f32
      %44 = vector.broadcast %cst_24 : f32 to vector<17x128xf32>
      %45 = arith.maximumf %43, %44 : vector<17x128xf32>
      %46 = arith.addf %42, %33 : vector<17x128xf32>
      %cst_25 = arith.constant 0.000000e+00 : f32
      %47 = vector.broadcast %cst_25 : f32 to vector<17x128xf32>
      %48 = arith.minimumf %46, %47 : vector<17x128xf32>
      %49 = arith.addf %45, %48 : vector<17x128xf32>
      %cst_26 = arith.constant 4.000000e+00 : f32
      %50 = arith.mulf %cst_26, %arg9 : f32
      %51 = arith.mulf %50, %arg9 : f32
      %cst_27 = arith.constant 1.000000e+00 : f32
      %52 = arith.addf %cst_27, %51 : f32
      %53 = math.sqrt %52 : f32
      %cst_28 = arith.constant 1.000000e+00 : f32
      %54 = arith.addf %cst_28, %53 : f32
      %cst_29 = arith.constant 5.000000e-01 : f32
      %55 = arith.mulf %54, %cst_29 : f32
      %cst_30 = arith.constant 1.000000e+00 : f32
      %56 = arith.subf %arg9, %cst_30 : f32
      %57 = arith.divf %56, %55 : f32
      %58 = arith.subf %49, %arg7 : vector<17x128xf32>
      %59 = vector.broadcast %57 : f32 to vector<17x128xf32>
      %60 = arith.mulf %59, %58 : vector<17x128xf32>
      %61 = arith.addf %49, %60 : vector<17x128xf32>
      scf.yield %49, %61, %55 : vector<17x128xf32>, vector<17x128xf32>, f32
    }
    %c0_18 = arith.constant 0 : index
    %c0_19 = arith.constant 0 : index
    %37 = vector.load %arg4[%c0_18, %c0_19] : memref<17x128xf32, #tpu.memory_space<vmem>>, vector<17x128xf32>
    tpu.vector_store %arg4[%c0_18, %c0_19], %36#0 {strides = array<i32>} : memref<17x128xf32, #tpu.memory_space<vmem>>, vector<17x128xf32>,
    %c0_20 = arith.constant 0 : index
    %c0_21 = arith.constant 0 : index
    %38 = vector.load %arg5[%c0_20, %c0_21] : memref<1x128xf32, #tpu.memory_space<vmem>>, vector<1x128xf32>
    tpu.vector_store %arg5[%c0_20, %c0_21], %21 {strides = array<i32>} : memref<1x128xf32, #tpu.memory_space<vmem>>, vector<1x128xf32>,
    return
  }
  func.func @transform_0(%arg0: i32) -> (i32, i32) {
    %c0_i32 = arith.constant 0 : i32
    %c0_i32_0 = arith.constant 0 : i32
    %c0_i32_1 = arith.constant 0 : i32
    return %c0_i32, %c0_i32_0 : i32, i32
  }
  func.func @transform_1(%arg0: i32) -> (i32, i32) {
    %c0_i32 = arith.constant 0 : i32
    %c0_i32_0 = arith.constant 0 : i32
    return %c0_i32, %arg0 : i32, i32
  }
  func.func @transform_2(%arg0: i32) -> (i32, i32) {
    %c0_i32 = arith.constant 0 : i32
    %c0_i32_0 = arith.constant 0 : i32
    return %c0_i32, %arg0 : i32, i32
  }
  func.func @transform_3(%arg0: i32) -> (i32, i32) {
    %c0_i32 = arith.constant 0 : i32
    %c0_i32_0 = arith.constant 0 : i32
    return %c0_i32, %arg0 : i32, i32
  }
  func.func @transform_4(%arg0: i32) -> (i32, i32) {
    %c0_i32 = arith.constant 0 : i32
    %c0_i32_0 = arith.constant 0 : i32
    return %c0_i32, %arg0 : i32, i32
  }
}

module attributes {stable_mosaic.version = 11 : i64} {
  func.func @kernel(%arg0: i32, %arg1: memref<8x17xf32, #tpu.memory_space<vmem>>, %arg2: memref<8x128xf32, #tpu.memory_space<vmem>>, %arg3: memref<8x128xf32, #tpu.memory_space<vmem>>, %arg4: memref<17x128xf32, #tpu.memory_space<vmem>>, %arg5: memref<1x128xf32, #tpu.memory_space<vmem>>, %arg6: memref<17x128xf32, #tpu.memory_space<vmem>>, %arg7: memref<8x128xf32, #tpu.memory_space<vmem>>) attributes {dimension_semantics = [#tpu.dimension_semantics<parallel>], iteration_bounds = array<i64: 1>, scalar_prefetch = 0 : i64, scratch_operands = 0 : i64, tpu.core_type = #tpu.core_type<tc>, window_params = [{pipeline_mode = #tpu.pipeline_mode<synchronous>, transform_indices = @transform_0, window_bounds = array<i64: 8, 17>}, {transform_indices = @transform_1, window_bounds = array<i64: 8, 128>}, {transform_indices = @transform_2, window_bounds = array<i64: 8, 128>}, {transform_indices = @transform_3, window_bounds = array<i64: 17, 128>}, {transform_indices = @transform_4, window_bounds = array<i64: 1, 128>}, {transform_indices = @transform_5, window_bounds = array<i64: 17, 128>}, {transform_indices = @transform_6, window_bounds = array<i64: 8, 128>}]} {
    %c0 = arith.constant 0 : index
    %c0_0 = arith.constant 0 : index
    %0 = vector.load %arg1[%c0, %c0_0] : memref<8x17xf32, #tpu.memory_space<vmem>>, vector<8x17xf32>
    %c0_1 = arith.constant 0 : index
    %c0_2 = arith.constant 0 : index
    %1 = vector.load %arg2[%c0_1, %c0_2] : memref<8x128xf32, #tpu.memory_space<vmem>>, vector<8x128xf32>
    %c0_3 = arith.constant 0 : index
    %c0_4 = arith.constant 0 : index
    %2 = vector.load %arg3[%c0_3, %c0_4] : memref<8x128xf32, #tpu.memory_space<vmem>>, vector<8x128xf32>
    %c0_5 = arith.constant 0 : index
    %c0_6 = arith.constant 0 : index
    %3 = vector.load %arg4[%c0_5, %c0_6] : memref<17x128xf32, #tpu.memory_space<vmem>>, vector<17x128xf32>
    %c0_7 = arith.constant 0 : index
    %c0_8 = arith.constant 0 : index
    %4 = vector.load %arg5[%c0_7, %c0_8] : memref<1x128xf32, #tpu.memory_space<vmem>>, vector<1x128xf32>
    %5 = arith.mulf %1, %2 : vector<8x128xf32>
    %cst = arith.constant dense<0.000000e+00> : vector<17x128xf32>
    %6 = tpu.matmul %0, %5, %cst {dimension_numbers = #tpu.dot_dimension_numbers<[0], [0], [1], [1], [0, 1, 1, 1], [], []>} : vector<8x17xf32>, vector<8x128xf32>, vector<17x128xf32> -> vector<17x128xf32>
    %7 = vector.broadcast %4 : vector<1x128xf32> to vector<17x128xf32>
    %8 = arith.mulf %6, %7 : vector<17x128xf32>
    %cst_9 = arith.constant 1.000000e-01 : f32
    %9 = vector.broadcast %cst_9 : f32 to vector<1x128xf32>
    %10 = arith.mulf %9, %4 : vector<1x128xf32>
    %11 = vector.broadcast %10 : vector<1x128xf32> to vector<17x128xf32>
    %12 = arith.mulf %3, %11 : vector<17x128xf32>
    %13 = vector.broadcast %4 : vector<1x128xf32> to vector<8x128xf32>
    %14 = arith.mulf %1, %13 : vector<8x128xf32>
    %15 = arith.subf %8, %12 : vector<17x128xf32>
    %16 = arith.addf %8, %12 : vector<17x128xf32>
    %cst_10 = arith.constant 0.000000e+00 : f32
    %17 = vector.broadcast %cst_10 : f32 to vector<17x128xf32>
    %cst_11 = arith.constant 1.000000e+00 : f32
    %c0_i32 = arith.constant 0 : i32
    %c100_i32 = arith.constant 100 : i32
    %18 = arith.addi %c0_i32, %c100_i32 : i32
    %c1_i32 = arith.constant 1 : i32
    %19:3 = scf.for %arg8 = %c0_i32 to %18 step %c1_i32 iter_args(%arg9 = %17, %arg10 = %17, %arg11 = %cst_11) -> (vector<17x128xf32>, vector<17x128xf32>, f32)  : i32 {
      %cst_17 = arith.constant dense<0.000000e+00> : vector<8x128xf32>
      %23 = tpu.matmul %0, %arg10, %cst_17 {dimension_numbers = #tpu.dot_dimension_numbers<[1], [0], [0], [1], [0, 0, 1, 1], [], []>} : vector<8x17xf32>, vector<17x128xf32>, vector<8x128xf32> -> vector<8x128xf32>
      %24 = arith.mulf %14, %23 : vector<8x128xf32>
      %cst_18 = arith.constant dense<0.000000e+00> : vector<17x128xf32>
      %25 = tpu.matmul %0, %24, %cst_18 {dimension_numbers = #tpu.dot_dimension_numbers<[0], [0], [1], [1], [0, 1, 1, 1], [], []>} : vector<8x17xf32>, vector<8x128xf32>, vector<17x128xf32> -> vector<17x128xf32>
      %26 = arith.subf %arg10, %25 : vector<17x128xf32>
      %27 = arith.addf %26, %15 : vector<17x128xf32>
      %cst_19 = arith.constant 0.000000e+00 : f32
      %28 = vector.broadcast %cst_19 : f32 to vector<17x128xf32>
      %29 = arith.maximumf %27, %28 : vector<17x128xf32>
      %30 = arith.addf %26, %16 : vector<17x128xf32>
      %cst_20 = arith.constant 0.000000e+00 : f32
      %31 = vector.broadcast %cst_20 : f32 to vector<17x128xf32>
      %32 = arith.minimumf %30, %31 : vector<17x128xf32>
      %33 = arith.addf %29, %32 : vector<17x128xf32>
      %cst_21 = arith.constant 4.000000e+00 : f32
      %34 = arith.mulf %cst_21, %arg11 : f32
      %35 = arith.mulf %34, %arg11 : f32
      %cst_22 = arith.constant 1.000000e+00 : f32
      %36 = arith.addf %cst_22, %35 : f32
      %37 = math.sqrt %36 : f32
      %cst_23 = arith.constant 1.000000e+00 : f32
      %38 = arith.addf %cst_23, %37 : f32
      %cst_24 = arith.constant 5.000000e-01 : f32
      %39 = arith.mulf %38, %cst_24 : f32
      %cst_25 = arith.constant 1.000000e+00 : f32
      %40 = arith.subf %arg11, %cst_25 : f32
      %41 = arith.divf %40, %39 : f32
      %42 = arith.subf %33, %arg9 : vector<17x128xf32>
      %43 = vector.broadcast %41 : f32 to vector<17x128xf32>
      %44 = arith.mulf %43, %42 : vector<17x128xf32>
      %45 = arith.addf %33, %44 : vector<17x128xf32>
      scf.yield %33, %45, %39 : vector<17x128xf32>, vector<17x128xf32>, f32
    }
    %c0_12 = arith.constant 0 : index
    %c0_13 = arith.constant 0 : index
    %20 = vector.load %arg6[%c0_12, %c0_13] : memref<17x128xf32, #tpu.memory_space<vmem>>, vector<17x128xf32>
    tpu.vector_store %arg6[%c0_12, %c0_13], %19#0 {strides = array<i32>} : memref<17x128xf32, #tpu.memory_space<vmem>>, vector<17x128xf32>,
    %cst_14 = arith.constant dense<0.000000e+00> : vector<8x128xf32>
    %21 = tpu.matmul %0, %19#0, %cst_14 {dimension_numbers = #tpu.dot_dimension_numbers<[1], [0], [0], [1], [0, 0, 1, 1], [], []>} : vector<8x17xf32>, vector<17x128xf32>, vector<8x128xf32> -> vector<8x128xf32>
    %c0_15 = arith.constant 0 : index
    %c0_16 = arith.constant 0 : index
    %22 = vector.load %arg7[%c0_15, %c0_16] : memref<8x128xf32, #tpu.memory_space<vmem>>, vector<8x128xf32>
    tpu.vector_store %arg7[%c0_15, %c0_16], %21 {strides = array<i32>} : memref<8x128xf32, #tpu.memory_space<vmem>>, vector<8x128xf32>,
    return
  }
  func.func @transform_0(%arg0: i32) -> (i32, i32) {
    %c0_i32 = arith.constant 0 : i32
    %c0_i32_0 = arith.constant 0 : i32
    %c0_i32_1 = arith.constant 0 : i32
    return %c0_i32, %c0_i32_0 : i32, i32
  }
  func.func @transform_1(%arg0: i32) -> (i32, i32) {
    %c0_i32 = arith.constant 0 : i32
    %c0_i32_0 = arith.constant 0 : i32
    return %c0_i32, %arg0 : i32, i32
  }
  func.func @transform_2(%arg0: i32) -> (i32, i32) {
    %c0_i32 = arith.constant 0 : i32
    %c0_i32_0 = arith.constant 0 : i32
    return %c0_i32, %arg0 : i32, i32
  }
  func.func @transform_3(%arg0: i32) -> (i32, i32) {
    %c0_i32 = arith.constant 0 : i32
    %c0_i32_0 = arith.constant 0 : i32
    return %c0_i32, %arg0 : i32, i32
  }
  func.func @transform_4(%arg0: i32) -> (i32, i32) {
    %c0_i32 = arith.constant 0 : i32
    %c0_i32_0 = arith.constant 0 : i32
    return %c0_i32, %arg0 : i32, i32
  }
  func.func @transform_5(%arg0: i32) -> (i32, i32) {
    %c0_i32 = arith.constant 0 : i32
    %c0_i32_0 = arith.constant 0 : i32
    return %c0_i32, %arg0 : i32, i32
  }
  func.func @transform_6(%arg0: i32) -> (i32, i32) {
    %c0_i32 = arith.constant 0 : i32
    %c0_i32_0 = arith.constant 0 : i32
    return %c0_i32, %arg0 : i32, i32
  }
}

</mosaic_0001>

<llo_original>
// kernel: mul.3
$region0: #{mul.3}
  #allocation0 [shape = 's32[1]{0}', space=sflag, size = 0x4, scoped, tag = 'scoped memory for mul.3']
  %s0 = inlined_call_operand.vmem [shape: f32[2,8,4,1], index: 0, kind: input, shape index: {}, may-alias: {0,1}]
  %s1 = inlined_call_operand.vmem [shape: f32[2,8,4,1], index: 1, kind: input, shape index: {}, may-alias: {0,1}]
  %s2 = inlined_call_operand.vmem [shape: f32[2,8,4,1], index: 2, kind: output, shape index: {}]
  %v3 = vld [vmem:[%s0] sm:$0x1]
  %v4 = vld [vmem:[%s1] sm:$0x1]
  %5 = xla_tuple %v3, %v4
  %6 = xla_tuple %5
  %v7 = vmul.f32 %v3, %v4
  %8 = xla_tuple %v7
  %9 = vst [vmem:[%s2] sm:$0x1] %v7
  %s10 = scalar_lea.vmem %s0, 4
  %v11 = vld [vmem:[%s10] sm:$0x1]
  %s12 = scalar_lea.vmem %s1, 4
  %v13 = vld [vmem:[%s12] sm:$0x1]
  %14 = xla_tuple %v11, %v13
  %15 = xla_tuple %14
  %v16 = vmul.f32 %v11, %v13
  %17 = xla_tuple %v16
  %s18 = scalar_lea.vmem %s2, 4
  %19 = vst [vmem:[%s18] sm:$0x1] %v16
  %s20 = scalar_lea.vmem %s0, 1
  %v21 = vld [vmem:[%s20] sm:$0x1]
  %s22 = scalar_lea.vmem %s1, 1
  %v23 = vld [vmem:[%s22] sm:$0x1]
  %24 = xla_tuple %v21, %v23
  %25 = xla_tuple %24
  %v26 = vmul.f32 %v21, %v23
  %27 = xla_tuple %v26
  %s28 = scalar_lea.vmem %s2, 1
  %29 = vst [vmem:[%s28] sm:$0x1] %v26
  %s30 = scalar_lea.vmem %s0, 5
  %v31 = vld [vmem:[%s30] sm:$0x1]
  %s32 = scalar_lea.vmem %s1, 5
  %v33 = vld [vmem:[%s32] sm:$0x1]
  %34 = xla_tuple %v31, %v33
  %35 = xla_tuple %34
  %v36 = vmul.f32 %v31, %v33
  %37 = xla_tuple %v36
  %s38 = scalar_lea.vmem %s2, 5
  %39 = vst [vmem:[%s38] sm:$0x1] %v36
  %s40 = scalar_lea.vmem %s0, 2
  %v41 = vld [vmem:[%s40] sm:$0x1]
  %s42 = scalar_lea.vmem %s1, 2
  %v43 = vld [vmem:[%s42] sm:$0x1]
  %44 = xla_tuple %v41, %v43
  %45 = xla_tuple %44
  %v46 = vmul.f32 %v41, %v43
  %47 = xla_tuple %v46
  %s48 = scalar_lea.vmem %s2, 2
  %49 = vst [vmem:[%s48] sm:$0x1] %v46
  %s50 = scalar_lea.vmem %s0, 6
  %v51 = vld [vmem:[%s50] sm:$0x1]
  %s52 = scalar_lea.vmem %s1, 6
  %v53 = vld [vmem:[%s52] sm:$0x1]
  %54 = xla_tuple %v51, %v53
  %55 = xla_tuple %54
  %v56 = vmul.f32 %v51, %v53
  %57 = xla_tuple %v56
  %s58 = scalar_lea.vmem %s2, 6
  %59 = vst [vmem:[%s58] sm:$0x1] %v56
  %s60 = scalar_lea.vmem %s0, 3
  %v61 = vld [vmem:[%s60] sm:$0x1]
  %s62 = scalar_lea.vmem %s1, 3
  %v63 = vld [vmem:[%s62] sm:$0x1]
  %64 = xla_tuple %v61, %v63
  %65 = xla_tuple %64
  %v66 = vmul.f32 %v61, %v63
  %67 = xla_tuple %v66
  %s68 = scalar_lea.vmem %s2, 3
  %69 = vst [vmem:[%s68] sm:$0x1] %v66
  %s70 = scalar_lea.vmem %s0, 7
  %v71 = vld [vmem:[%s70] sm:$0x1]
  %s72 = scalar_lea.vmem %s1, 7
  %v73 = vld [vmem:[%s72] sm:$0x1]
  %74 = xla_tuple %v71, %v73
  %75 = xla_tuple %74
  %v76 = vmul.f32 %v71, %v73
  %77 = xla_tuple %v76
  %s78 = scalar_lea.vmem %s2, 7
  %79 = vst [vmem:[%s78] sm:$0x1] %v76

// kernel: mask_dyan_encoder_forward.3
$region0: #{mask_dyan_encoder_forward.3}
  #allocation0 [shape = 'u32[]', space=smem, size = 0x4, offset = 0x4, fixed_abs, tag = 'smem constant byte address 0x4 - core index']
  #allocation1 [shape = 'u32[144,128]{1,0:T(1,128)}', space=vmem, size = 0x12000, scoped, tag = 'internal scratch']
  %s0 = inlined_call_operand.vmem [shape: f32[8,17], index: 0, kind: input, shape index: {}]
  %s1 = inlined_call_operand.vmem [shape: f32[8,128], index: 1, kind: input, shape index: {}]
  %s2 = inlined_call_operand.vmem [shape: f32[8,128], index: 2, kind: input, shape index: {}]
  %s3 = inlined_call_operand.vmem [shape: f32[17,128], index: 3, kind: input, shape index: {}]
  %s4 = inlined_call_operand.vmem [shape: f32[1,128], index: 4, kind: input, shape index: {}]
  %s5 = inlined_call_operand.vmem [shape: f32[17,128], index: 5, kind: output, shape index: {0}]
  %s6 = inlined_call_operand.vmem [shape: f32[8,128], index: 6, kind: output, shape index: {1}]
  %7 = xla_tuple %s5, %s6
  %s8 = sld [smem:[#allocation0]]
  $region45: #{mask_dyan_encoder_forward.3} parent=0
    _
  %s10 = ssub.s32 1, %s8
  %s11 = scalar_select 0, %s10, %s8
  // Predicated region
  $region2: #{mask_dyan_encoder_forward.3} parent=0 // pred_check
    _
  $region3: #{mask_dyan_encoder_forward.3} parent=0 // pred_check_branch
    %13 = sbr.rel (0) target = $region5
  $region4: #{mask_dyan_encoder_forward.3} parent=0 // pred_region
    _
  $region5: #{mask_dyan_encoder_forward.3} parent=0 // pred_fallthru
    _
  // Predicated region
  $region6: #{mask_dyan_encoder_forward.3} parent=0 // pred_check
    _
  $region7: #{mask_dyan_encoder_forward.3} parent=0 // pred_check_branch
    %15 = sbr.rel (0) target = $region9
  $region8: #{mask_dyan_encoder_forward.3} parent=0 // pred_region
    _
  $region9: #{mask_dyan_encoder_forward.3} parent=0 // pred_fallthru
    _
  // Predicated region
  $region10: #{mask_dyan_encoder_forward.3} parent=0 // pred_check
    _
  $region11: #{mask_dyan_encoder_forward.3} parent=0 // pred_check_branch
    %17 = sbr.rel (0) target = $region13
  $region12: #{mask_dyan_encoder_forward.3} parent=0 // pred_region
    _
  $region13: #{mask_dyan_encoder_forward.3} parent=0 // pred_fallthru
    _
  // Predicated region
  $region14: #{mask_dyan_encoder_forward.3} parent=0 // pred_check
    _
  $region15: #{mask_dyan_encoder_forward.3} parent=0 // pred_check_branch
    %19 = sbr.rel (0) target = $region17
  $region16: #{mask_dyan_encoder_forward.3} parent=0 // pred_region
    _
  $region17: #{mask_dyan_encoder_forward.3} parent=0 // pred_fallthru
    _
  // Predicated region
  $region18: #{mask_dyan_encoder_forward.3} parent=0 // pred_check
    _
  $region19: #{mask_dyan_encoder_forward.3} parent=0 // pred_check_branch
    %21 = sbr.rel (0) target = $region21
  $region20: #{mask_dyan_encoder_forward.3} parent=0 // pred_region
    _
  $region21: #{mask_dyan_encoder_forward.3} parent=0 // pred_fallthru
    _
  %v22 = vld [vmem:[%s0] sm:$0xff]
  %v23 = vld [vmem:[%s1] sm:$0xff]
  %v24 = vld [vmem:[%s2] sm:$0xff]
  %v25 = vld [vmem:[%s3] sm:$0xff]
  %v26 = vld [vmem:[%s3 + $0x8] sm:$0xff]
  %v27 = vld [vmem:[%s3 + $0x10] sm:$0x1]
  %v28 = vld [vmem:[%s4] sm:$0x1]
  %v29 = vmul.f32 %v23, %v24
  %30 = vxpose.xlu0.b32.start [1/16] %v22, 128
  %31 = vxpose.xlu0.b32.cont [2/16] 0.0, 128
  %32 = vxpose.xlu0.b32.cont [3/16] 0.0, 128
  %33 = vxpose.xlu0.b32.cont [4/16] 0.0, 128
  %34 = vxpose.xlu0.b32.cont [5/16] 0.0, 128
  %35 = vxpose.xlu0.b32.cont [6/16] 0.0, 128
  %36 = vxpose.xlu0.b32.cont [7/16] 0.0, 128
  %37 = vxpose.xlu0.b32.cont [8/16] 0.0, 128
  %38 = vxpose.xlu0.b32.cont [9/16] 0.0, 128
  %39 = vxpose.xlu0.b32.cont [10/16] 0.0, 128
  %40 = vxpose.xlu0.b32.cont [11/16] 0.0, 128
  %41 = vxpose.xlu0.b32.cont [12/16] 0.0, 128
  %42 = vxpose.xlu0.b32.cont [13/16] 0.0, 128
  %43 = vxpose.xlu0.b32.cont [14/16] 0.0, 128
  %44 = vxpose.xlu0.b32.cont [15/16] 0.0, 128
  %45 = vxpose.xlu0.b32.end [16/16] 0.0, 128
  %v46 = vpop.trf.xlu0
  %v47 = vpop.trf.xlu0
  %v48 = vpop.trf.xlu0
  %v49 = vpop.trf.xlu0
  %v50 = vpop.trf.xlu0
  %v51 = vpop.trf.xlu0
  %v52 = vpop.trf.xlu0
  %v53 = vpop.trf.xlu0
  %v54 = vpop.trf.xlu0
  %v55 = vpop.trf.xlu0
  %v56 = vpop.trf.xlu0
  %v57 = vpop.trf.xlu0
  %v58 = vpop.trf.xlu0
  %v59 = vpop.trf.xlu0
  %v60 = vpop.trf.xlu0
  %v61 = vpop.trf.xlu0
  %vm62 = vcmask 64512
  %v64 = vsel %vm62, %v46, 0
  %v67 = vsel %vm62, %v47, 0
  %v70 = vsel %vm62, %v48, 0
  %72 = vmatprep.subr.mxu0 0.0
  %73 = vmatpush1.msra.mxu0 %v29
  %74 = vmatprep.subr.mxu0 0.0
  %75 = vmatpush1.msra.mxu0 0.0
  %76 = vmatprep.subr.mxu0 0.0
  %77 = vmatpush1.msra.mxu0 0.0
  %78 = vmatprep.subr.mxu0 0.0
  %79 = vmatpush1.msra.mxu0 0.0
  %80 = vmatprep.subr.mxu0 0.0
  %81 = vmatpush1.msra.mxu0 0.0
  %82 = vmatprep.subr.mxu0 0.0
  %83 = vmatpush1.msra.mxu0 0.0
  %84 = vmatprep.subr.mxu0 0.0
  %85 = vmatpush1.msra.mxu0 0.0
  %86 = vmatprep.subr.mxu0 0.0
  %87 = vmatpush1.msra.mxu0 0.0
  %88 = vmatprep.subr.mxu0 0.0
  %89 = vmatpush1.msra.mxu0 0.0
  %90 = vmatprep.subr.mxu0 0.0
  %91 = vmatpush1.msra.mxu0 0.0
  %92 = vmatprep.subr.mxu0 0.0
  %93 = vmatpush1.msra.mxu0 0.0
  %94 = vmatprep.subr.mxu0 0.0
  %95 = vmatpush1.msra.mxu0 0.0
  %96 = vmatprep.subr.mxu0 0.0
  %97 = vmatpush1.msra.mxu0 0.0
  %98 = vmatprep.subr.mxu0 0.0
  %99 = vmatpush1.msra.mxu0 0.0
  %100 = vmatprep.subr.mxu0 0.0
  %101 = vmatpush1.msra.mxu0 0.0
  %102 = vmatprep.subr.mxu0 0.0
  %103 = vmatpush1.msra.mxu0 0.0
  %104 = vmatprep.subr.mxu0 0.0
  %105 = vmatpush1.msra.mxu0 0.0
  %106 = vmatprep.subr.mxu0 0.0
  %107 = vmatpush1.msra.mxu0 0.0
  %108 = vmatprep.subr.mxu0 0.0
  %109 = vmatpush1.msra.mxu0 0.0
  %110 = vmatprep.subr.mxu0 0.0
  %111 = vmatpush1.msra.mxu0 0.0
  %112 = vmatprep.subr.mxu0 0.0
  %113 = vmatpush1.msra.mxu0 0.0
  %114 = vmatprep.subr.mxu0 0.0
  %115 = vmatpush1.msra.mxu0 0.0
  %116 = vmatprep.subr.mxu0 0.0
  %117 = vmatpush1.msra.mxu0 0.0
  %118 = vmatprep.subr.mxu0 0.0
  %119 = vmatpush1.msra.mxu0 0.0
  %120 = vmatprep.subr.mxu0 0.0
  %121 = vmatpush1.msra.mxu0 0.0
  %122 = vmatprep.subr.mxu0 0.0
  %123 = vmatpush1.msra.mxu0 0.0
  %124 = vmatprep.subr.mxu0 0.0
  %125 = vmatpush1.msra.mxu0 0.0
  %126 = vmatprep.subr.mxu0 0.0
  %127 = vmatpush1.msra.mxu0 0.0
  %128 = vmatprep.subr.mxu0 0.0
  %129 = vmatpush1.msra.mxu0 0.0
  %130 = vmatprep.subr.mxu0 0.0
  %131 = vmatpush1.msra.mxu0 0.0
  %132 = vmatprep.subr.mxu0 0.0
  %133 = vmatpush1.msra.mxu0 0.0
  %134 = vmatprep.subr.mxu0 0.0
  %135 = vmatpush1.msra.mxu0 0.0
  %136 = vmatprep.mubr.f32.mxu0 0.0
  %137 = vmatmul.mubr.f32.gmra.mrb[0].mxu0 %v64
  %v138 = vpop.f32.mrb[0].mxu0
  %v139 = vadd.f32 0.0, %v138
  %v140 = vpop.f32.mrb[0].mxu0
  %141 = vmatprep.mubr.f32.mxu0 0.0
  %142 = vmatmul.mubr.f32.gmra.mrb[0].mxu0 %v67
  %v143 = vpop.f32.mrb[0].mxu0
  %v144 = vadd.f32 0.0, %v143
  %v145 = vpop.f32.mrb[0].mxu0
  %146 = vmatprep.mubr.f32.mxu0 0.0
  %147 = vmatmul.mubr.f32.gmra.mrb[0].mxu0 %v70
  %v148 = vpop.f32.mrb[0].mxu0
  %v149 = vadd.f32 0.0, %v148
  %v150 = vpop.f32.mrb[0].mxu0
  %151 = vdwg.mxu0
  %v153 = vlaneseq
  %v154 = vshrl.u32 %v153, 7
  %v155 = vsub.s32 0, %v154
  %v156 = vrot.slane %v28, %v155
  %v158 = vmul.f32 %v139, %v156
  %v159 = vmul.f32 %v144, %v156
  %v160 = vmul.f32 %v149, %v156
  %v161 = vmul.f32 %v28, 0.1
  %v163 = vlaneseq
  %v164 = vshrl.u32 %v163, 7
  %v165 = vsub.s32 0, %v164
  %v166 = vrot.slane %v161, %v165
  %v168 = vmul.f32 %v25, %v166
  %v169 = vmul.f32 %v26, %v166
  %v170 = vmul.f32 %v27, %v166
  %v171 = vmul.f32 %v23, %v156
  %v172 = vsub.f32 %v158, %v168
  %v173 = vsub.f32 %v159, %v169
  %v174 = vsub.f32 %v160, %v170
  %v175 = vadd.f32 %v158, %v168
  %v176 = vadd.f32 %v159, %v169
  %v177 = vadd.f32 %v160, %v170
  loop: start=0, step=1, limit=100
  $region22: #{mask_dyan_encoder_forward.3} parent=0 // loop_pre_header
    _
  $region23: #{mask_dyan_encoder_forward.3} parent=0 // loop_header
    %s179 = sphi 0, %s183
    %p180 = scmp.ge.s32.totalorder %s179, 100
    %v184 = vphi 0.0, %v365
    %v185 = vphi 0.0, %v366
    %v186 = vphi 0.0, %v367
    %v187 = vphi 0.0, %v394
    %v188 = vphi 0.0, %v395
    %v189 = vphi 0.0, %v396
    %s190 = sphi 1.0, %s381
  $region24: #{mask_dyan_encoder_forward.3} parent=0 // loop_header_branch
    %182 = sbr.rel (%p180) target = $region28
  $region25: #{mask_dyan_encoder_forward.3} parent=0 // loop_body
    %vm191 = vcmask 138240
    %v193 = vsel %vm191, %v22, 0
    %vm195 = vcmask 1040384
    %v197 = vsel %vm195, %v189, 0
    %199 = vmatprep.subr.mxu0 0.0
    %200 = vmatpush1.msra.mxu0 %v187
    %201 = vmatprep.subr.mxu0 0.0
    %202 = vmatpush1.msra.mxu0 %v188
    %203 = vmatprep.subr.mxu0 0.0
    %204 = vmatpush1.msra.mxu0 %v197
    %205 = vmatprep.subr.mxu0 0.0
    %206 = vmatpush1.msra.mxu0 0.0
    %207 = vmatprep.subr.mxu0 0.0
    %208 = vmatpush1.msra.mxu0 0.0
    %209 = vmatprep.subr.mxu0 0.0
    %210 = vmatpush1.msra.mxu0 0.0
    %211 = vmatprep.subr.mxu0 0.0
    %212 = vmatpush1.msra.mxu0 0.0
    %213 = vmatprep.subr.mxu0 0.0
    %214 = vmatpush1.msra.mxu0 0.0
    %215 = vmatprep.subr.mxu0 0.0
    %216 = vmatpush1.msra.mxu0 0.0
    %217 = vmatprep.subr.mxu0 0.0
    %218 = vmatpush1.msra.mxu0 0.0
    %219 = vmatprep.subr.mxu0 0.0
    %220 = vmatpush1.msra.mxu0 0.0
    %221 = vmatprep.subr.mxu0 0.0
    %222 = vmatpush1.msra.mxu0 0.0
    %223 = vmatprep.subr.mxu0 0.0
    %224 = vmatpush1.msra.mxu0 0.0
    %225 = vmatprep.subr.mxu0 0.0
    %226 = vmatpush1.msra.mxu0 0.0
    %227 = vmatprep.subr.mxu0 0.0
    %228 = vmatpush1.msra.mxu0 0.0
    %229 = vmatprep.subr.mxu0 0.0
    %230 = vmatpush1.msra.mxu0 0.0
    %231 = vmatprep.subr.mxu0 0.0
    %232 = vmatpush1.msra.mxu0 0.0
    %233 = vmatprep.subr.mxu0 0.0
    %234 = vmatpush1.msra.mxu0 0.0
    %235 = vmatprep.subr.mxu0 0.0
    %236 = vmatpush1.msra.mxu0 0.0
    %237 = vmatprep.subr.mxu0 0.0
    %238 = vmatpush1.msra.mxu0 0.0
    %239 = vmatprep.subr.mxu0 0.0
    %240 = vmatpush1.msra.mxu0 0.0
    %241 = vmatprep.subr.mxu0 0.0
    %242 = vmatpush1.msra.mxu0 0.0
    %243 = vmatprep.subr.mxu0 0.0
    %244 = vmatpush1.msra.mxu0 0.0
    %245 = vmatprep.subr.mxu0 0.0
    %246 = vmatpush1.msra.mxu0 0.0
    %247 = vmatprep.subr.mxu0 0.0
    %248 = vmatpush1.msra.mxu0 0.0
    %249 = vmatprep.subr.mxu0 0.0
    %250 = vmatpush1.msra.mxu0 0.0
    %251 = vmatprep.subr.mxu0 0.0
    %252 = vmatpush1.msra.mxu0 0.0
    %253 = vmatprep.subr.mxu0 0.0
    %254 = vmatpush1.msra.mxu0 0.0
    %255 = vmatprep.subr.mxu0 0.0
    %256 = vmatpush1.msra.mxu0 0.0
    %257 = vmatprep.subr.mxu0 0.0
    %258 = vmatpush1.msra.mxu0 0.0
    %259 = vmatprep.subr.mxu0 0.0
    %260 = vmatpush1.msra.mxu0 0.0
    %261 = vmatprep.subr.mxu0 0.0
    %262 = vmatpush1.msra.mxu0 0.0
    %263 = vmatprep.mubr.f32.mxu0 0.0
    %264 = vmatmul.mubr.f32.gmra.mrb[0].mxu0 %v193
    %v265 = vpop.f32.mrb[0].mxu0
    %v266 = vadd.f32 0.0, %v265
    %v267 = vpop.f32.mrb[0].mxu0
    %268 = vdwg.mxu0
    %v269 = vmul.f32 %v171, %v266
    %270 = vmatprep.subr.mxu0 0.0
    %271 = vmatpush1.msra.mxu0 %v269
    %272 = vmatprep.subr.mxu0 0.0
    %273 = vmatpush1.msra.mxu0 0.0
    %274 = vmatprep.subr.mxu0 0.0
    %275 = vmatpush1.msra.mxu0 0.0
    %276 = vmatprep.subr.mxu0 0.0
    %277 = vmatpush1.msra.mxu0 0.0
    %278 = vmatprep.subr.mxu0 0.0
    %279 = vmatpush1.msra.mxu0 0.0
    %280 = vmatprep.subr.mxu0 0.0
    %281 = vmatpush1.msra.mxu0 0.0
    %282 = vmatprep.subr.mxu0 0.0
    %283 = vmatpush1.msra.mxu0 0.0
    %284 = vmatprep.subr.mxu0 0.0
    %285 = vmatpush1.msra.mxu0 0.0
    %286 = vmatprep.subr.mxu0 0.0
    %287 = vmatpush1.msra.mxu0 0.0
    %288 = vmatprep.subr.mxu0 0.0
    %289 = vmatpush1.msra.mxu0 0.0
    %290 = vmatprep.subr.mxu0 0.0
    %291 = vmatpush1.msra.mxu0 0.0
    %292 = vmatprep.subr.mxu0 0.0
    %293 = vmatpush1.msra.mxu0 0.0
    %294 = vmatprep.subr.mxu0 0.0
    %295 = vmatpush1.msra.mxu0 0.0
    %296 = vmatprep.subr.mxu0 0.0
    %297 = vmatpush1.msra.mxu0 0.0
    %298 = vmatprep.subr.mxu0 0.0
    %299 = vmatpush1.msra.mxu0 0.0
    %300 = vmatprep.subr.mxu0 0.0
    %301 = vmatpush1.msra.mxu0 0.0
    %302 = vmatprep.subr.mxu0 0.0
    %303 = vmatpush1.msra.mxu0 0.0
    %304 = vmatprep.subr.mxu0 0.0
    %305 = vmatpush1.msra.mxu0 0.0
    %306 = vmatprep.subr.mxu0 0.0
    %307 = vmatpush1.msra.mxu0 0.0
    %308 = vmatprep.subr.mxu0 0.0
    %309 = vmatpush1.msra.mxu0 0.0
    %310 = vmatprep.subr.mxu0 0.0
    %311 = vmatpush1.msra.mxu0 0.0
    %312 = vmatprep.subr.mxu0 0.0
    %313 = vmatpush1.msra.mxu0 0.0
    %314 = vmatprep.subr.mxu0 0.0
    %315 = vmatpush1.msra.mxu0 0.0
    %316 = vmatprep.subr.mxu0 0.0
    %317 = vmatpush1.msra.mxu0 0.0
    %318 = vmatprep.subr.mxu0 0.0
    %319 = vmatpush1.msra.mxu0 0.0
    %320 = vmatprep.subr.mxu0 0.0
    %321 = vmatpush1.msra.mxu0 0.0
    %322 = vmatprep.subr.mxu0 0.0
    %323 = vmatpush1.msra.mxu0 0.0
    %324 = vmatprep.subr.mxu0 0.0
    %325 = vmatpush1.msra.mxu0 0.0
    %326 = vmatprep.subr.mxu0 0.0
    %327 = vmatpush1.msra.mxu0 0.0
    %328 = vmatprep.subr.mxu0 0.0
    %329 = vmatpush1.msra.mxu0 0.0
    %330 = vmatprep.subr.mxu0 0.0
    %331 = vmatpush1.msra.mxu0 0.0
    %332 = vmatprep.subr.mxu0 0.0
    %333 = vmatpush1.msra.mxu0 0.0
    %334 = vmatprep.mubr.f32.mxu0 0.0
    %335 = vmatmul.mubr.f32.gmra.mrb[0].mxu0 %v64
    %v336 = vpop.f32.mrb[0].mxu0
    %v337 = vadd.f32 0.0, %v336
    %v338 = vpop.f32.mrb[0].mxu0
    %339 = vmatprep.mubr.f32.mxu0 0.0
    %340 = vmatmul.mubr.f32.gmra.mrb[0].mxu0 %v67
    %v341 = vpop.f32.mrb[0].mxu0
    %v342 = vadd.f32 0.0, %v341
    %v343 = vpop.f32.mrb[0].mxu0
    %344 = vmatprep.mubr.f32.mxu0 0.0
    %345 = vmatmul.mubr.f32.gmra.mrb[0].mxu0 %v70
    %v346 = vpop.f32.mrb[0].mxu0
    %v347 = vadd.f32 0.0, %v346
    %v348 = vpop.f32.mrb[0].mxu0
    %349 = vdwg.mxu0
    %v350 = vsub.f32 %v187, %v337
    %v351 = vsub.f32 %v188, %v342
    %v352 = vsub.f32 %v189, %v347
    %v353 = vadd.f32 %v350, %v172
    %v354 = vadd.f32 %v351, %v173
    %v355 = vadd.f32 %v352, %v174
    %v356 = vmax.f32 %v353, 0.0
    %v357 = vmax.f32 %v354, 0.0
    %v358 = vmax.f32 %v355, 0.0
    %v359 = vadd.f32 %v350, %v175
    %v360 = vadd.f32 %v351, %v176
    %v361 = vadd.f32 %v352, %v177
    %v362 = vmin.f32 %v359, 0.0
    %v363 = vmin.f32 %v360, 0.0
    %v364 = vmin.f32 %v361, 0.0
    %v365 = vadd.f32 %v356, %v362
    %v366 = vadd.f32 %v357, %v363
    %v367 = vadd.f32 %v358, %v364
    %s368 = smul.f32 %s190, 4.0
    %s369 = smul.f32 %s368, %s190
    %s370 = sadd.f32 %s369, 1.0
    %v371 = vstv %s370
    %v372 = vrsqrt.pop %v371
    %v373 = vmul.f32 %v371, %v372
    %vm374 = vcmp.eq.f32.partialorder %v371, inf
    %v375 = vsel %vm374, %v371, %v373
    %vm376 = vcmp.eq.f32.partialorder %v371, 0.0
    %v377 = vand.u32 %v371, 2147483648
    %v378 = vsel %vm376, %v377, %v375
    %s379 = vtos %v378
    %s380 = sadd.f32 %s379, 1.0
    %s381 = smul.f32 %s380, 0.5
    %s382 = ssub.f32 %s190, 1.0
    %v383 = vstv %s381
    %v384 = vrcp.pop %v383
    %s385 = vtos %v384
    %s386 = smul.f32 %s382, %s385
    %v387 = vsub.f32 %v365, %v184
    %v388 = vsub.f32 %v366, %v185
    %v389 = vsub.f32 %v367, %v186
    %v390 = vstv %s386
    %v391 = vmul.f32 %v390, %v387
    %v392 = vmul.f32 %v390, %v388
    %v393 = vmul.f32 %v390, %v389
    %v394 = vadd.f32 %v365, %v391
    %v395 = vadd.f32 %v366, %v392
    %v396 = vadd.f32 %v367, %v393
  $region26: #{mask_dyan_encoder_forward.3} parent=0 // loop_footer
    %s183 = sadd.s32 1, %s179
  $region27: #{mask_dyan_encoder_forward.3} parent=0 // loop_footer_branch
    %178 = sbr.rel target = $region23
  $region28: #{mask_dyan_encoder_forward.3} parent=0 // loop_exit
    _
  %397 = vst [vmem:[%s5] sm:$0xff] %v184
  %398 = vst [vmem:[%s5 + $0x8] sm:$0xff] %v185
  %399 = vst [vmem:[%s5 + $0x10] sm:$0x1] %v186
  %vm400 = vcmask 138240
  %v402 = vsel %vm400, %v22, 0
  %vm404 = vcmask 1040384
  %v406 = vsel %vm404, %v186, 0
  %408 = vmatprep.subr.mxu0 0.0
  %409 = vmatpush1.msra.mxu0 %v184
  %410 = vmatprep.subr.mxu0 0.0
  %411 = vmatpush1.msra.mxu0 %v185
  %412 = vmatprep.subr.mxu0 0.0
  %413 = vmatpush1.msra.mxu0 %v406
  %414 = vmatprep.subr.mxu0 0.0
  %415 = vmatpush1.msra.mxu0 0.0
  %416 = vmatprep.subr.mxu0 0.0
  %417 = vmatpush1.msra.mxu0 0.0
  %418 = vmatprep.subr.mxu0 0.0
  %419 = vmatpush1.msra.mxu0 0.0
  %420 = vmatprep.subr.mxu0 0.0
  %421 = vmatpush1.msra.mxu0 0.0
  %422 = vmatprep.subr.mxu0 0.0
  %423 = vmatpush1.msra.mxu0 0.0
  %424 = vmatprep.subr.mxu0 0.0
  %425 = vmatpush1.msra.mxu0 0.0
  %426 = vmatprep.subr.mxu0 0.0
  %427 = vmatpush1.msra.mxu0 0.0
  %428 = vmatprep.subr.mxu0 0.0
  %429 = vmatpush1.msra.mxu0 0.0
  %430 = vmatprep.subr.mxu0 0.0
  %431 = vmatpush1.msra.mxu0 0.0
  %432 = vmatprep.subr.mxu0 0.0
  %433 = vmatpush1.msra.mxu0 0.0
  %434 = vmatprep.subr.mxu0 0.0
  %435 = vmatpush1.msra.mxu0 0.0
  %436 = vmatprep.subr.mxu0 0.0
  %437 = vmatpush1.msra.mxu0 0.0
  %438 = vmatprep.subr.mxu0 0.0
  %439 = vmatpush1.msra.mxu0 0.0
  %440 = vmatprep.subr.mxu0 0.0
  %441 = vmatpush1.msra.mxu0 0.0
  %442 = vmatprep.subr.mxu0 0.0
  %443 = vmatpush1.msra.mxu0 0.0
  %444 = vmatprep.subr.mxu0 0.0
  %445 = vmatpush1.msra.mxu0 0.0
  %446 = vmatprep.subr.mxu0 0.0
  %447 = vmatpush1.msra.mxu0 0.0
  %448 = vmatprep.subr.mxu0 0.0
  %449 = vmatpush1.msra.mxu0 0.0
  %450 = vmatprep.subr.mxu0 0.0
  %451 = vmatpush1.msra.mxu0 0.0
  %452 = vmatprep.subr.mxu0 0.0
  %453 = vmatpush1.msra.mxu0 0.0
  %454 = vmatprep.subr.mxu0 0.0
  %455 = vmatpush1.msra.mxu0 0.0
  %456 = vmatprep.subr.mxu0 0.0
  %457 = vmatpush1.msra.mxu0 0.0
  %458 = vmatprep.subr.mxu0 0.0
  %459 = vmatpush1.msra.mxu0 0.0
  %460 = vmatprep.subr.mxu0 0.0
  %461 = vmatpush1.msra.mxu0 0.0
  %462 = vmatprep.subr.mxu0 0.0
  %463 = vmatpush1.msra.mxu0 0.0
  %464 = vmatprep.subr.mxu0 0.0
  %465 = vmatpush1.msra.mxu0 0.0
  %466 = vmatprep.subr.mxu0 0.0
  %467 = vmatpush1.msra.mxu0 0.0
  %468 = vmatprep.subr.mxu0 0.0
  %469 = vmatpush1.msra.mxu0 0.0
  %470 = vmatprep.subr.mxu0 0.0
  %471 = vmatpush1.msra.mxu0 0.0
  %472 = vmatprep.mubr.f32.mxu0 0.0
  %473 = vmatmul.mubr.f32.gmra.mrb[0].mxu0 %v402
  %v474 = vpop.f32.mrb[0].mxu0
  %v475 = vadd.f32 0.0, %v474
  %v476 = vpop.f32.mrb[0].mxu0
  %477 = vdwg.mxu0
  %478 = vst [vmem:[%s6] sm:$0xff] %v475
  // Predicated region
  $region29: #{mask_dyan_encoder_forward.3} parent=0 // pred_check
    _
  $region30: #{mask_dyan_encoder_forward.3} parent=0 // pred_check_branch
    %480 = sbr.rel (0) target = $region32
  $region31: #{mask_dyan_encoder_forward.3} parent=0 // pred_region
    _
  $region32: #{mask_dyan_encoder_forward.3} parent=0 // pred_fallthru
    _
  // Predicated region
  $region33: #{mask_dyan_encoder_forward.3} parent=0 // pred_check
    _
  $region34: #{mask_dyan_encoder_forward.3} parent=0 // pred_check_branch
    %482 = sbr.rel (0) target = $region36
  $region35: #{mask_dyan_encoder_forward.3} parent=0 // pred_region
    _
  $region36: #{mask_dyan_encoder_forward.3} parent=0 // pred_fallthru
    _
  // Predicated region
  $region37: #{mask_dyan_encoder_forward.3} parent=0 // pred_check
    _
  $region38: #{mask_dyan_encoder_forward.3} parent=0 // pred_check_branch
    %484 = sbr.rel (0) target = $region40
  $region39: #{mask_dyan_encoder_forward.3} parent=0 // pred_region
    _
  $region40: #{mask_dyan_encoder_forward.3} parent=0 // pred_fallthru
    _
  // Predicated region
  $region41: #{mask_dyan_encoder_forward.3} parent=0 // pred_check
    _
  $region42: #{mask_dyan_encoder_forward.3} parent=0 // pred_check_branch
    %486 = sbr.rel (0) target = $region44
  $region43: #{mask_dyan_encoder_forward.3} parent=0 // pred_region
    _
  $region44: #{mask_dyan_encoder_forward.3} parent=0 // pred_fallthru
    _

// kernel: mask_dyan_encoder_forward.2
$region0: #{mask_dyan_encoder_forward.2}
  #allocation0 [shape = 'u32[]', space=smem, size = 0x4, offset = 0x4, fixed_abs, tag = 'smem constant byte address 0x4 - core index']
  #allocation1 [shape = 'u32[144,128]{1,0:T(1,128)}', space=vmem, size = 0x12000, scoped, tag = 'internal scratch']
  %s0 = inlined_call_operand.vmem [shape: f32[8,17], index: 0, kind: input, shape index: {}]
  %s1 = inlined_call_operand.vmem [shape: f32[8,128], index: 1, kind: input, shape index: {}]
  %s2 = inlined_call_operand.vmem [shape: f32[8,128], index: 2, kind: input, shape index: {}]
  %s3 = inlined_call_operand.vmem [shape: f32[17,128], index: 3, kind: output, shape index: {0}]
  %s4 = inlined_call_operand.vmem [shape: f32[1,128], index: 4, kind: output, shape index: {1}]
  %5 = xla_tuple %s3, %s4
  %s6 = sld [smem:[#allocation0]]
  $region44: #{mask_dyan_encoder_forward.2} parent=0
    _
  %s8 = ssub.s32 1, %s6
  %s9 = scalar_select 0, %s8, %s6
  // Predicated region
  $region2: #{mask_dyan_encoder_forward.2} parent=0 // pred_check
    _
  $region3: #{mask_dyan_encoder_forward.2} parent=0 // pred_check_branch
    %11 = sbr.rel (0) target = $region5
  $region4: #{mask_dyan_encoder_forward.2} parent=0 // pred_region
    _
  $region5: #{mask_dyan_encoder_forward.2} parent=0 // pred_fallthru
    _
  // Predicated region
  $region6: #{mask_dyan_encoder_forward.2} parent=0 // pred_check
    _
  $region7: #{mask_dyan_encoder_forward.2} parent=0 // pred_check_branch
    %13 = sbr.rel (0) target = $region9
  $region8: #{mask_dyan_encoder_forward.2} parent=0 // pred_region
    _
  $region9: #{mask_dyan_encoder_forward.2} parent=0 // pred_fallthru
    _
  // Predicated region
  $region10: #{mask_dyan_encoder_forward.2} parent=0 // pred_check
    _
  $region11: #{mask_dyan_encoder_forward.2} parent=0 // pred_check_branch
    %15 = sbr.rel (0) target = $region13
  $region12: #{mask_dyan_encoder_forward.2} parent=0 // pred_region
    _
  $region13: #{mask_dyan_encoder_forward.2} parent=0 // pred_fallthru
    _
  %v16 = vld [vmem:[%s0] sm:$0xff]
  %v17 = vld [vmem:[%s1] sm:$0xff]
  %v18 = vld [vmem:[%s2] sm:$0xff]
  loop: start=0, step=1, limit=40
  $region14: #{mask_dyan_encoder_forward.2} parent=0 // loop_pre_header
    _
  $region15: #{mask_dyan_encoder_forward.2} parent=0 // loop_header
    %s20 = sphi 0, %s24
    %p21 = scmp.ge.s32.totalorder %s20, 40
    %v25 = vphi 1.0, %v250
    %v26 = vphi 1.0, %v251
    %v27 = vphi 1.0, %v252
  $region16: #{mask_dyan_encoder_forward.2} parent=0 // loop_header_branch
    %23 = sbr.rel (%p21) target = $region20
  $region17: #{mask_dyan_encoder_forward.2} parent=0 // loop_body
    %vm28 = vcmask 138240
    %v30 = vsel %vm28, %v16, 0
    %vm32 = vcmask 1040384
    %v34 = vsel %vm32, %v27, 0
    %36 = vmatprep.subr.mxu0 0.0
    %37 = vmatpush1.msra.mxu0 %v25
    %38 = vmatprep.subr.mxu0 0.0
    %39 = vmatpush1.msra.mxu0 %v26
    %40 = vmatprep.subr.mxu0 0.0
    %41 = vmatpush1.msra.mxu0 %v34
    %42 = vmatprep.subr.mxu0 0.0
    %43 = vmatpush1.msra.mxu0 0.0
    %44 = vmatprep.subr.mxu0 0.0
    %45 = vmatpush1.msra.mxu0 0.0
    %46 = vmatprep.subr.mxu0 0.0
    %47 = vmatpush1.msra.mxu0 0.0
    %48 = vmatprep.subr.mxu0 0.0
    %49 = vmatpush1.msra.mxu0 0.0
    %50 = vmatprep.subr.mxu0 0.0
    %51 = vmatpush1.msra.mxu0 0.0
    %52 = vmatprep.subr.mxu0 0.0
    %53 = vmatpush1.msra.mxu0 0.0
    %54 = vmatprep.subr.mxu0 0.0
    %55 = vmatpush1.msra.mxu0 0.0
    %56 = vmatprep.subr.mxu0 0.0
    %57 = vmatpush1.msra.mxu0 0.0
    %58 = vmatprep.subr.mxu0 0.0
    %59 = vmatpush1.msra.mxu0 0.0
    %60 = vmatprep.subr.mxu0 0.0
    %61 = vmatpush1.msra.mxu0 0.0
    %62 = vmatprep.subr.mxu0 0.0
    %63 = vmatpush1.msra.mxu0 0.0
    %64 = vmatprep.subr.mxu0 0.0
    %65 = vmatpush1.msra.mxu0 0.0
    %66 = vmatprep.subr.mxu0 0.0
    %67 = vmatpush1.msra.mxu0 0.0
    %68 = vmatprep.subr.mxu0 0.0
    %69 = vmatpush1.msra.mxu0 0.0
    %70 = vmatprep.subr.mxu0 0.0
    %71 = vmatpush1.msra.mxu0 0.0
    %72 = vmatprep.subr.mxu0 0.0
    %73 = vmatpush1.msra.mxu0 0.0
    %74 = vmatprep.subr.mxu0 0.0
    %75 = vmatpush1.msra.mxu0 0.0
    %76 = vmatprep.subr.mxu0 0.0
    %77 = vmatpush1.msra.mxu0 0.0
    %78 = vmatprep.subr.mxu0 0.0
    %79 = vmatpush1.msra.mxu0 0.0
    %80 = vmatprep.subr.mxu0 0.0
    %81 = vmatpush1.msra.mxu0 0.0
    %82 = vmatprep.subr.mxu0 0.0
    %83 = vmatpush1.msra.mxu0 0.0
    %84 = vmatprep.subr.mxu0 0.0
    %85 = vmatpush1.msra.mxu0 0.0
    %86 = vmatprep.subr.mxu0 0.0
    %87 = vmatpush1.msra.mxu0 0.0
    %88 = vmatprep.subr.mxu0 0.0
    %89 = vmatpush1.msra.mxu0 0.0
    %90 = vmatprep.subr.mxu0 0.0
    %91 = vmatpush1.msra.mxu0 0.0
    %92 = vmatprep.subr.mxu0 0.0
    %93 = vmatpush1.msra.mxu0 0.0
    %94 = vmatprep.subr.mxu0 0.0
    %95 = vmatpush1.msra.mxu0 0.0
    %96 = vmatprep.subr.mxu0 0.0
    %97 = vmatpush1.msra.mxu0 0.0
    %98 = vmatprep.subr.mxu0 0.0
    %99 = vmatpush1.msra.mxu0 0.0
    %100 = vmatprep.mubr.f32.mxu0 0.0
    %101 = vmatmul.mubr.f32.gmra.mrb[0].mxu0 %v30
    %v102 = vpop.f32.mrb[0].mxu0
    %v103 = vadd.f32 0.0, %v102
    %v104 = vpop.f32.mrb[0].mxu0
    %105 = vdwg.mxu0
    %v106 = vmul.f32 %v17, %v103
    %107 = vxpose.xlu0.b32.start [1/16] %v16, 128
    %108 = vxpose.xlu0.b32.cont [2/16] 0.0, 128
    %109 = vxpose.xlu0.b32.cont [3/16] 0.0, 128
    %110 = vxpose.xlu0.b32.cont [4/16] 0.0, 128
    %111 = vxpose.xlu0.b32.cont [5/16] 0.0, 128
    %112 = vxpose.xlu0.b32.cont [6/16] 0.0, 128
    %113 = vxpose.xlu0.b32.cont [7/16] 0.0, 128
    %114 = vxpose.xlu0.b32.cont [8/16] 0.0, 128
    %115 = vxpose.xlu0.b32.cont [9/16] 0.0, 128
    %116 = vxpose.xlu0.b32.cont [10/16] 0.0, 128
    %117 = vxpose.xlu0.b32.cont [11/16] 0.0, 128
    %118 = vxpose.xlu0.b32.cont [12/16] 0.0, 128
    %119 = vxpose.xlu0.b32.cont [13/16] 0.0, 128
    %120 = vxpose.xlu0.b32.cont [14/16] 0.0, 128
    %121 = vxpose.xlu0.b32.cont [15/16] 0.0, 128
    %122 = vxpose.xlu0.b32.end [16/16] 0.0, 128
    %v123 = vpop.trf.xlu0
    %v124 = vpop.trf.xlu0
    %v125 = vpop.trf.xlu0
    %v126 = vpop.trf.xlu0
    %v127 = vpop.trf.xlu0
    %v128 = vpop.trf.xlu0
    %v129 = vpop.trf.xlu0
    %v130 = vpop.trf.xlu0
    %v131 = vpop.trf.xlu0
    %v132 = vpop.trf.xlu0
    %v133 = vpop.trf.xlu0
    %v134 = vpop.trf.xlu0
    %v135 = vpop.trf.xlu0
    %v136 = vpop.trf.xlu0
    %v137 = vpop.trf.xlu0
    %v138 = vpop.trf.xlu0
    %vm139 = vcmask 64512
    %v141 = vsel %vm139, %v123, 0
    %v144 = vsel %vm139, %v124, 0
    %v147 = vsel %vm139, %v125, 0
    %149 = vmatprep.subr.mxu0 0.0
    %150 = vmatpush1.msra.mxu0 %v106
    %151 = vmatprep.subr.mxu0 0.0
    %152 = vmatpush1.msra.mxu0 0.0
    %153 = vmatprep.subr.mxu0 0.0
    %154 = vmatpush1.msra.mxu0 0.0
    %155 = vmatprep.subr.mxu0 0.0
    %156 = vmatpush1.msra.mxu0 0.0
    %157 = vmatprep.subr.mxu0 0.0
    %158 = vmatpush1.msra.mxu0 0.0
    %159 = vmatprep.subr.mxu0 0.0
    %160 = vmatpush1.msra.mxu0 0.0
    %161 = vmatprep.subr.mxu0 0.0
    %162 = vmatpush1.msra.mxu0 0.0
    %163 = vmatprep.subr.mxu0 0.0
    %164 = vmatpush1.msra.mxu0 0.0
    %165 = vmatprep.subr.mxu0 0.0
    %166 = vmatpush1.msra.mxu0 0.0
    %167 = vmatprep.subr.mxu0 0.0
    %168 = vmatpush1.msra.mxu0 0.0
    %169 = vmatprep.subr.mxu0 0.0
    %170 = vmatpush1.msra.mxu0 0.0
    %171 = vmatprep.subr.mxu0 0.0
    %172 = vmatpush1.msra.mxu0 0.0
    %173 = vmatprep.subr.mxu0 0.0
    %174 = vmatpush1.msra.mxu0 0.0
    %175 = vmatprep.subr.mxu0 0.0
    %176 = vmatpush1.msra.mxu0 0.0
    %177 = vmatprep.subr.mxu0 0.0
    %178 = vmatpush1.msra.mxu0 0.0
    %179 = vmatprep.subr.mxu0 0.0
    %180 = vmatpush1.msra.mxu0 0.0
    %181 = vmatprep.subr.mxu0 0.0
    %182 = vmatpush1.msra.mxu0 0.0
    %183 = vmatprep.subr.mxu0 0.0
    %184 = vmatpush1.msra.mxu0 0.0
    %185 = vmatprep.subr.mxu0 0.0
    %186 = vmatpush1.msra.mxu0 0.0
    %187 = vmatprep.subr.mxu0 0.0
    %188 = vmatpush1.msra.mxu0 0.0
    %189 = vmatprep.subr.mxu0 0.0
    %190 = vmatpush1.msra.mxu0 0.0
    %191 = vmatprep.subr.mxu0 0.0
    %192 = vmatpush1.msra.mxu0 0.0
    %193 = vmatprep.subr.mxu0 0.0
    %194 = vmatpush1.msra.mxu0 0.0
    %195 = vmatprep.subr.mxu0 0.0
    %196 = vmatpush1.msra.mxu0 0.0
    %197 = vmatprep.subr.mxu0 0.0
    %198 = vmatpush1.msra.mxu0 0.0
    %199 = vmatprep.subr.mxu0 0.0
    %200 = vmatpush1.msra.mxu0 0.0
    %201 = vmatprep.subr.mxu0 0.0
    %202 = vmatpush1.msra.mxu0 0.0
    %203 = vmatprep.subr.mxu0 0.0
    %204 = vmatpush1.msra.mxu0 0.0
    %205 = vmatprep.subr.mxu0 0.0
    %206 = vmatpush1.msra.mxu0 0.0
    %207 = vmatprep.subr.mxu0 0.0
    %208 = vmatpush1.msra.mxu0 0.0
    %209 = vmatprep.subr.mxu0 0.0
    %210 = vmatpush1.msra.mxu0 0.0
    %211 = vmatprep.subr.mxu0 0.0
    %212 = vmatpush1.msra.mxu0 0.0
    %213 = vmatprep.mubr.f32.mxu0 0.0
    %214 = vmatmul.mubr.f32.gmra.mrb[0].mxu0 %v141
    %v215 = vpop.f32.mrb[0].mxu0
    %v216 = vadd.f32 0.0, %v215
    %v217 = vpop.f32.mrb[0].mxu0
    %218 = vmatprep.mubr.f32.mxu0 0.0
    %219 = vmatmul.mubr.f32.gmra.mrb[0].mxu0 %v144
    %v220 = vpop.f32.mrb[0].mxu0
    %v221 = vadd.f32 0.0, %v220
    %v222 = vpop.f32.mrb[0].mxu0
    %223 = vmatprep.mubr.f32.mxu0 0.0
    %224 = vmatmul.mubr.f32.gmra.mrb[0].mxu0 %v147
    %v225 = vpop.f32.mrb[0].mxu0
    %v226 = vadd.f32 0.0, %v225
    %v227 = vpop.f32.mrb[0].mxu0
    %228 = vdwg.mxu0
    %v229 = vmul.f32 %v216, %v216
    %v230 = vmul.f32 %v221, %v221
    %v231 = vmul.f32 %v226, %v226
    %v232 = vadd.f32 %v229, %v230
    %v233 = vsel %vm32, %v231, 0.0
    %v234 = vadd.f32 %v232, %v233
    %v235 = vrot.slane %v234, 4
    %v236 = vadd.f32 %v234, %v235
    %v237 = vrot.slane %v236, 2
    %v238 = vadd.f32 %v236, %v237
    %v239 = vrot.slane %v238, 1
    %v240 = vadd.f32 %v238, %v239
    %v241 = vrsqrt.pop %v240
    %v242 = vmul.f32 %v240, %v241
    %vm243 = vcmp.eq.f32.partialorder %v240, inf
    %v244 = vsel %vm243, %v240, %v242
    %vm245 = vcmp.eq.f32.partialorder %v240, 0.0
    %v246 = vand.u32 %v240, 2147483648
    %v247 = vsel %vm245, %v246, %v244
    %v248 = vmax.f32 %v247, 1e-30
    %v249 = vrcp.pop %v248
    %v250 = vmul.f32 %v216, %v249
    %v251 = vmul.f32 %v221, %v249
    %v252 = vmul.f32 %v226, %v249
  $region18: #{mask_dyan_encoder_forward.2} parent=0 // loop_footer
    %s24 = sadd.s32 1, %s20
  $region19: #{mask_dyan_encoder_forward.2} parent=0 // loop_footer_branch
    %19 = sbr.rel target = $region15
  $region20: #{mask_dyan_encoder_forward.2} parent=0 // loop_exit
    _
  %vm253 = vcmask 138240
  %v255 = vsel %vm253, %v16, 0
  %vm257 = vcmask 1040384
  %v259 = vsel %vm257, %v27, 0
  %261 = vmatprep.subr.mxu0 0.0
  %262 = vmatpush1.msra.mxu0 %v25
  %263 = vmatprep.subr.mxu0 0.0
  %264 = vmatpush1.msra.mxu0 %v26
  %265 = vmatprep.subr.mxu0 0.0
  %266 = vmatpush1.msra.mxu0 %v259
  %267 = vmatprep.subr.mxu0 0.0
  %268 = vmatpush1.msra.mxu0 0.0
  %269 = vmatprep.subr.mxu0 0.0
  %270 = vmatpush1.msra.mxu0 0.0
  %271 = vmatprep.subr.mxu0 0.0
  %272 = vmatpush1.msra.mxu0 0.0
  %273 = vmatprep.subr.mxu0 0.0
  %274 = vmatpush1.msra.mxu0 0.0
  %275 = vmatprep.subr.mxu0 0.0
  %276 = vmatpush1.msra.mxu0 0.0
  %277 = vmatprep.subr.mxu0 0.0
  %278 = vmatpush1.msra.mxu0 0.0
  %279 = vmatprep.subr.mxu0 0.0
  %280 = vmatpush1.msra.mxu0 0.0
  %281 = vmatprep.subr.mxu0 0.0
  %282 = vmatpush1.msra.mxu0 0.0
  %283 = vmatprep.subr.mxu0 0.0
  %284 = vmatpush1.msra.mxu0 0.0
  %285 = vmatprep.subr.mxu0 0.0
  %286 = vmatpush1.msra.mxu0 0.0
  %287 = vmatprep.subr.mxu0 0.0
  %288 = vmatpush1.msra.mxu0 0.0
  %289 = vmatprep.subr.mxu0 0.0
  %290 = vmatpush1.msra.mxu0 0.0
  %291 = vmatprep.subr.mxu0 0.0
  %292 = vmatpush1.msra.mxu0 0.0
  %293 = vmatprep.subr.mxu0 0.0
  %294 = vmatpush1.msra.mxu0 0.0
  %295 = vmatprep.subr.mxu0 0.0
  %296 = vmatpush1.msra.mxu0 0.0
  %297 = vmatprep.subr.mxu0 0.0
  %298 = vmatpush1.msra.mxu0 0.0
  %299 = vmatprep.subr.mxu0 0.0
  %300 = vmatpush1.msra.mxu0 0.0
  %301 = vmatprep.subr.mxu0 0.0
  %302 = vmatpush1.msra.mxu0 0.0
  %303 = vmatprep.subr.mxu0 0.0
  %304 = vmatpush1.msra.mxu0 0.0
  %305 = vmatprep.subr.mxu0 0.0
  %306 = vmatpush1.msra.mxu0 0.0
  %307 = vmatprep.subr.mxu0 0.0
  %308 = vmatpush1.msra.mxu0 0.0
  %309 = vmatprep.subr.mxu0 0.0
  %310 = vmatpush1.msra.mxu0 0.0
  %311 = vmatprep.subr.mxu0 0.0
  %312 = vmatpush1.msra.mxu0 0.0
  %313 = vmatprep.subr.mxu0 0.0
  %314 = vmatpush1.msra.mxu0 0.0
  %315 = vmatprep.subr.mxu0 0.0
  %316 = vmatpush1.msra.mxu0 0.0
  %317 = vmatprep.subr.mxu0 0.0
  %318 = vmatpush1.msra.mxu0 0.0
  %319 = vmatprep.subr.mxu0 0.0
  %320 = vmatpush1.msra.mxu0 0.0
  %321 = vmatprep.subr.mxu0 0.0
  %322 = vmatpush1.msra.mxu0 0.0
  %323 = vmatprep.subr.mxu0 0.0
  %324 = vmatpush1.msra.mxu0 0.0
  %325 = vmatprep.mubr.f32.mxu0 0.0
  %326 = vmatmul.mubr.f32.gmra.mrb[0].mxu0 %v255
  %v327 = vpop.f32.mrb[0].mxu0
  %v328 = vadd.f32 0.0, %v327
  %v329 = vpop.f32.mrb[0].mxu0
  %330 = vdwg.mxu0
  %v331 = vmul.f32 %v17, %v328
  %332 = vxpose.xlu0.b32.start [1/16] %v16, 128
  %333 = vxpose.xlu0.b32.cont [2/16] 0.0, 128
  %334 = vxpose.xlu0.b32.cont [3/16] 0.0, 128
  %335 = vxpose.xlu0.b32.cont [4/16] 0.0, 128
  %336 = vxpose.xlu0.b32.cont [5/16] 0.0, 128
  %337 = vxpose.xlu0.b32.cont [6/16] 0.0, 128
  %338 = vxpose.xlu0.b32.cont [7/16] 0.0, 128
  %339 = vxpose.xlu0.b32.cont [8/16] 0.0, 128
  %340 = vxpose.xlu0.b32.cont [9/16] 0.0, 128
  %341 = vxpose.xlu0.b32.cont [10/16] 0.0, 128
  %342 = vxpose.xlu0.b32.cont [11/16] 0.0, 128
  %343 = vxpose.xlu0.b32.cont [12/16] 0.0, 128
  %344 = vxpose.xlu0.b32.cont [13/16] 0.0, 128
  %345 = vxpose.xlu0.b32.cont [14/16] 0.0, 128
  %346 = vxpose.xlu0.b32.cont [15/16] 0.0, 128
  %347 = vxpose.xlu0.b32.end [16/16] 0.0, 128
  %v348 = vpop.trf.xlu0
  %v349 = vpop.trf.xlu0
  %v350 = vpop.trf.xlu0
  %v351 = vpop.trf.xlu0
  %v352 = vpop.trf.xlu0
  %v353 = vpop.trf.xlu0
  %v354 = vpop.trf.xlu0
  %v355 = vpop.trf.xlu0
  %v356 = vpop.trf.xlu0
  %v357 = vpop.trf.xlu0
  %v358 = vpop.trf.xlu0
  %v359 = vpop.trf.xlu0
  %v360 = vpop.trf.xlu0
  %v361 = vpop.trf.xlu0
  %v362 = vpop.trf.xlu0
  %v363 = vpop.trf.xlu0
  %vm364 = vcmask 64512
  %v366 = vsel %vm364, %v348, 0
  %v369 = vsel %vm364, %v349, 0
  %v372 = vsel %vm364, %v350, 0
  %374 = vmatprep.subr.mxu0 0.0
  %375 = vmatpush1.msra.mxu0 %v331
  %376 = vmatprep.subr.mxu0 0.0
  %377 = vmatpush1.msra.mxu0 0.0
  %378 = vmatprep.subr.mxu0 0.0
  %379 = vmatpush1.msra.mxu0 0.0
  %380 = vmatprep.subr.mxu0 0.0
  %381 = vmatpush1.msra.mxu0 0.0
  %382 = vmatprep.subr.mxu0 0.0
  %383 = vmatpush1.msra.mxu0 0.0
  %384 = vmatprep.subr.mxu0 0.0
  %385 = vmatpush1.msra.mxu0 0.0
  %386 = vmatprep.subr.mxu0 0.0
  %387 = vmatpush1.msra.mxu0 0.0
  %388 = vmatprep.subr.mxu0 0.0
  %389 = vmatpush1.msra.mxu0 0.0
  %390 = vmatprep.subr.mxu0 0.0
  %391 = vmatpush1.msra.mxu0 0.0
  %392 = vmatprep.subr.mxu0 0.0
  %393 = vmatpush1.msra.mxu0 0.0
  %394 = vmatprep.subr.mxu0 0.0
  %395 = vmatpush1.msra.mxu0 0.0
  %396 = vmatprep.subr.mxu0 0.0
  %397 = vmatpush1.msra.mxu0 0.0
  %398 = vmatprep.subr.mxu0 0.0
  %399 = vmatpush1.msra.mxu0 0.0
  %400 = vmatprep.subr.mxu0 0.0
  %401 = vmatpush1.msra.mxu0 0.0
  %402 = vmatprep.subr.mxu0 0.0
  %403 = vmatpush1.msra.mxu0 0.0
  %404 = vmatprep.subr.mxu0 0.0
  %405 = vmatpush1.msra.mxu0 0.0
  %406 = vmatprep.subr.mxu0 0.0
  %407 = vmatpush1.msra.mxu0 0.0
  %408 = vmatprep.subr.mxu0 0.0
  %409 = vmatpush1.msra.mxu0 0.0
  %410 = vmatprep.subr.mxu0 0.0
  %411 = vmatpush1.msra.mxu0 0.0
  %412 = vmatprep.subr.mxu0 0.0
  %413 = vmatpush1.msra.mxu0 0.0
  %414 = vmatprep.subr.mxu0 0.0
  %415 = vmatpush1.msra.mxu0 0.0
  %416 = vmatprep.subr.mxu0 0.0
  %417 = vmatpush1.msra.mxu0 0.0
  %418 = vmatprep.subr.mxu0 0.0
  %419 = vmatpush1.msra.mxu0 0.0
  %420 = vmatprep.subr.mxu0 0.0
  %421 = vmatpush1.msra.mxu0 0.0
  %422 = vmatprep.subr.mxu0 0.0
  %423 = vmatpush1.msra.mxu0 0.0
  %424 = vmatprep.subr.mxu0 0.0
  %425 = vmatpush1.msra.mxu0 0.0
  %426 = vmatprep.subr.mxu0 0.0
  %427 = vmatpush1.msra.mxu0 0.0
  %428 = vmatprep.subr.mxu0 0.0
  %429 = vmatpush1.msra.mxu0 0.0
  %430 = vmatprep.subr.mxu0 0.0
  %431 = vmatpush1.msra.mxu0 0.0
  %432 = vmatprep.subr.mxu0 0.0
  %433 = vmatpush1.msra.mxu0 0.0
  %434 = vmatprep.subr.mxu0 0.0
  %435 = vmatpush1.msra.mxu0 0.0
  %436 = vmatprep.subr.mxu0 0.0
  %437 = vmatpush1.msra.mxu0 0.0
  %438 = vmatprep.mubr.f32.mxu0 0.0
  %439 = vmatmul.mubr.f32.gmra.mrb[0].mxu0 %v366
  %v440 = vpop.f32.mrb[0].mxu0
  %v441 = vadd.f32 0.0, %v440
  %v442 = vpop.f32.mrb[0].mxu0
  %443 = vmatprep.mubr.f32.mxu0 0.0
  %444 = vmatmul.mubr.f32.gmra.mrb[0].mxu0 %v369
  %v445 = vpop.f32.mrb[0].mxu0
  %v446 = vadd.f32 0.0, %v445
  %v447 = vpop.f32.mrb[0].mxu0
  %448 = vmatprep.mubr.f32.mxu0 0.0
  %449 = vmatmul.mubr.f32.gmra.mrb[0].mxu0 %v372
  %v450 = vpop.f32.mrb[0].mxu0
  %v451 = vadd.f32 0.0, %v450
  %v452 = vpop.f32.mrb[0].mxu0
  %453 = vdwg.mxu0
  %v454 = vmul.f32 %v25, %v441
  %v455 = vmul.f32 %v26, %v446
  %v456 = vmul.f32 %v27, %v451
  %v457 = vadd.f32 %v454, %v455
  %v458 = vsel %vm257, %v456, 0.0
  %v459 = vadd.f32 %v457, %v458
  %v460 = vrot.slane %v459, 4
  %v461 = vadd.f32 %v459, %v460
  %v462 = vrot.slane %v461, 2
  %v463 = vadd.f32 %v461, %v462
  %v464 = vrot.slane %v463, 1
  %v465 = vadd.f32 %v463, %v464
  %v466 = vmul.f32 %v25, %v25
  %v467 = vmul.f32 %v26, %v26
  %v468 = vmul.f32 %v27, %v27
  %v469 = vadd.f32 %v466, %v467
  %v470 = vsel %vm257, %v468, 0.0
  %v471 = vadd.f32 %v469, %v470
  %v472 = vrot.slane %v471, 4
  %v473 = vadd.f32 %v471, %v472
  %v474 = vrot.slane %v473, 2
  %v475 = vadd.f32 %v473, %v474
  %v476 = vrot.slane %v475, 1
  %v477 = vadd.f32 %v475, %v476
  %v478 = vmax.f32 %v477, 1e-30
  %v479 = vrcp.pop %v478
  %v480 = vmul.f32 %v465, %v479
  %v481 = vmax.f32 %v480, 1e-06
  %v482 = vrcp.pop %v481
  %v483 = vmul.f32 1.0, %v482
  %v484 = vmul.f32 %v17, %v18
  %485 = vmatprep.subr.mxu0 0.0
  %486 = vmatpush1.msra.mxu0 %v484
  %487 = vmatprep.subr.mxu0 0.0
  %488 = vmatpush1.msra.mxu0 0.0
  %489 = vmatprep.subr.mxu0 0.0
  %490 = vmatpush1.msra.mxu0 0.0
  %491 = vmatprep.subr.mxu0 0.0
  %492 = vmatpush1.msra.mxu0 0.0
  %493 = vmatprep.subr.mxu0 0.0
  %494 = vmatpush1.msra.mxu0 0.0
  %495 = vmatprep.subr.mxu0 0.0
  %496 = vmatpush1.msra.mxu0 0.0
  %497 = vmatprep.subr.mxu0 0.0
  %498 = vmatpush1.msra.mxu0 0.0
  %499 = vmatprep.subr.mxu0 0.0
  %500 = vmatpush1.msra.mxu0 0.0
  %501 = vmatprep.subr.mxu0 0.0
  %502 = vmatpush1.msra.mxu0 0.0
  %503 = vmatprep.subr.mxu0 0.0
  %504 = vmatpush1.msra.mxu0 0.0
  %505 = vmatprep.subr.mxu0 0.0
  %506 = vmatpush1.msra.mxu0 0.0
  %507 = vmatprep.subr.mxu0 0.0
  %508 = vmatpush1.msra.mxu0 0.0
  %509 = vmatprep.subr.mxu0 0.0
  %510 = vmatpush1.msra.mxu0 0.0
  %511 = vmatprep.subr.mxu0 0.0
  %512 = vmatpush1.msra.mxu0 0.0
  %513 = vmatprep.subr.mxu0 0.0
  %514 = vmatpush1.msra.mxu0 0.0
  %515 = vmatprep.subr.mxu0 0.0
  %516 = vmatpush1.msra.mxu0 0.0
  %517 = vmatprep.subr.mxu0 0.0
  %518 = vmatpush1.msra.mxu0 0.0
  %519 = vmatprep.subr.mxu0 0.0
  %520 = vmatpush1.msra.mxu0 0.0
  %521 = vmatprep.subr.mxu0 0.0
  %522 = vmatpush1.msra.mxu0 0.0
  %523 = vmatprep.subr.mxu0 0.0
  %524 = vmatpush1.msra.mxu0 0.0
  %525 = vmatprep.subr.mxu0 0.0
  %526 = vmatpush1.msra.mxu0 0.0
  %527 = vmatprep.subr.mxu0 0.0
  %528 = vmatpush1.msra.mxu0 0.0
  %529 = vmatprep.subr.mxu0 0.0
  %530 = vmatpush1.msra.mxu0 0.0
  %531 = vmatprep.subr.mxu0 0.0
  %532 = vmatpush1.msra.mxu0 0.0
  %533 = vmatprep.subr.mxu0 0.0
  %534 = vmatpush1.msra.mxu0 0.0
  %535 = vmatprep.subr.mxu0 0.0
  %536 = vmatpush1.msra.mxu0 0.0
  %537 = vmatprep.subr.mxu0 0.0
  %538 = vmatpush1.msra.mxu0 0.0
  %539 = vmatprep.subr.mxu0 0.0
  %540 = vmatpush1.msra.mxu0 0.0
  %541 = vmatprep.subr.mxu0 0.0
  %542 = vmatpush1.msra.mxu0 0.0
  %543 = vmatprep.subr.mxu0 0.0
  %544 = vmatpush1.msra.mxu0 0.0
  %545 = vmatprep.subr.mxu0 0.0
  %546 = vmatpush1.msra.mxu0 0.0
  %547 = vmatprep.subr.mxu0 0.0
  %548 = vmatpush1.msra.mxu0 0.0
  %549 = vmatprep.mubr.f32.mxu0 0.0
  %550 = vmatmul.mubr.f32.gmra.mrb[0].mxu0 %v366
  %v551 = vpop.f32.mrb[0].mxu0
  %v552 = vadd.f32 0.0, %v551
  %v553 = vpop.f32.mrb[0].mxu0
  %554 = vmatprep.mubr.f32.mxu0 0.0
  %555 = vmatmul.mubr.f32.gmra.mrb[0].mxu0 %v369
  %v556 = vpop.f32.mrb[0].mxu0
  %v557 = vadd.f32 0.0, %v556
  %v558 = vpop.f32.mrb[0].mxu0
  %559 = vmatprep.mubr.f32.mxu0 0.0
  %560 = vmatmul.mubr.f32.gmra.mrb[0].mxu0 %v372
  %v561 = vpop.f32.mrb[0].mxu0
  %v562 = vadd.f32 0.0, %v561
  %v563 = vpop.f32.mrb[0].mxu0
  %564 = vdwg.mxu0
  %v565 = vmul.f32 %v552, %v483
  %v566 = vmul.f32 %v557, %v483
  %v567 = vmul.f32 %v562, %v483
  %v568 = vmul.f32 %v483, 0.1
  %v569 = vmul.f32 %v17, %v483
  %v570 = vsub.f32 %v565, %v568
  %v571 = vsub.f32 %v566, %v568
  %v572 = vsub.f32 %v567, %v568
  %v573 = vadd.f32 %v565, %v568
  %v574 = vadd.f32 %v566, %v568
  %v575 = vadd.f32 %v567, %v568
  loop: start=0, step=1, limit=100
  $region21: #{mask_dyan_encoder_forward.2} parent=0 // loop_pre_header
    _
  $region22: #{mask_dyan_encoder_forward.2} parent=0 // loop_header
    %s577 = sphi 0, %s581
    %p578 = scmp.ge.s32.totalorder %s577, 100
    %v582 = vphi 0.0, %v758
    %v583 = vphi 0.0, %v759
    %v584 = vphi 0.0, %v760
    %v585 = vphi 0.0, %v787
    %v586 = vphi 0.0, %v788
    %v587 = vphi 0.0, %v789
    %s588 = sphi 1.0, %s774
  $region23: #{mask_dyan_encoder_forward.2} parent=0 // loop_header_branch
    %580 = sbr.rel (%p578) target = $region27
  $region24: #{mask_dyan_encoder_forward.2} parent=0 // loop_body
    %v590 = vsel %vm257, %v587, 0
    %592 = vmatprep.subr.mxu0 0.0
    %593 = vmatpush1.msra.mxu0 %v585
    %594 = vmatprep.subr.mxu0 0.0
    %595 = vmatpush1.msra.mxu0 %v586
    %596 = vmatprep.subr.mxu0 0.0
    %597 = vmatpush1.msra.mxu0 %v590
    %598 = vmatprep.subr.mxu0 0.0
    %599 = vmatpush1.msra.mxu0 0.0
    %600 = vmatprep.subr.mxu0 0.0
    %601 = vmatpush1.msra.mxu0 0.0
    %602 = vmatprep.subr.mxu0 0.0
    %603 = vmatpush1.msra.mxu0 0.0
    %604 = vmatprep.subr.mxu0 0.0
    %605 = vmatpush1.msra.mxu0 0.0
    %606 = vmatprep.subr.mxu0 0.0
    %607 = vmatpush1.msra.mxu0 0.0
    %608 = vmatprep.subr.mxu0 0.0
    %609 = vmatpush1.msra.mxu0 0.0
    %610 = vmatprep.subr.mxu0 0.0
    %611 = vmatpush1.msra.mxu0 0.0
    %612 = vmatprep.subr.mxu0 0.0
    %613 = vmatpush1.msra.mxu0 0.0
    %614 = vmatprep.subr.mxu0 0.0
    %615 = vmatpush1.msra.mxu0 0.0
    %616 = vmatprep.subr.mxu0 0.0
    %617 = vmatpush1.msra.mxu0 0.0
    %618 = vmatprep.subr.mxu0 0.0
    %619 = vmatpush1.msra.mxu0 0.0
    %620 = vmatprep.subr.mxu0 0.0
    %621 = vmatpush1.msra.mxu0 0.0
    %622 = vmatprep.subr.mxu0 0.0
    %623 = vmatpush1.msra.mxu0 0.0
    %624 = vmatprep.subr.mxu0 0.0
    %625 = vmatpush1.msra.mxu0 0.0
    %626 = vmatprep.subr.mxu0 0.0
    %627 = vmatpush1.msra.mxu0 0.0
    %628 = vmatprep.subr.mxu0 0.0
    %629 = vmatpush1.msra.mxu0 0.0
    %630 = vmatprep.subr.mxu0 0.0
    %631 = vmatpush1.msra.mxu0 0.0
    %632 = vmatprep.subr.mxu0 0.0
    %633 = vmatpush1.msra.mxu0 0.0
    %634 = vmatprep.subr.mxu0 0.0
    %635 = vmatpush1.msra.mxu0 0.0
    %636 = vmatprep.subr.mxu0 0.0
    %637 = vmatpush1.msra.mxu0 0.0
    %638 = vmatprep.subr.mxu0 0.0
    %639 = vmatpush1.msra.mxu0 0.0
    %640 = vmatprep.subr.mxu0 0.0
    %641 = vmatpush1.msra.mxu0 0.0
    %642 = vmatprep.subr.mxu0 0.0
    %643 = vmatpush1.msra.mxu0 0.0
    %644 = vmatprep.subr.mxu0 0.0
    %645 = vmatpush1.msra.mxu0 0.0
    %646 = vmatprep.subr.mxu0 0.0
    %647 = vmatpush1.msra.mxu0 0.0
    %648 = vmatprep.subr.mxu0 0.0
    %649 = vmatpush1.msra.mxu0 0.0
    %650 = vmatprep.subr.mxu0 0.0
    %651 = vmatpush1.msra.mxu0 0.0
    %652 = vmatprep.subr.mxu0 0.0
    %653 = vmatpush1.msra.mxu0 0.0
    %654 = vmatprep.subr.mxu0 0.0
    %655 = vmatpush1.msra.mxu0 0.0
    %656 = vmatprep.mubr.f32.mxu0 0.0
    %657 = vmatmul.mubr.f32.gmra.mrb[0].mxu0 %v255
    %v658 = vpop.f32.mrb[0].mxu0
    %v659 = vadd.f32 0.0, %v658
    %v660 = vpop.f32.mrb[0].mxu0
    %661 = vdwg.mxu0
    %v662 = vmul.f32 %v569, %v659
    %663 = vmatprep.subr.mxu0 0.0
    %664 = vmatpush1.msra.mxu0 %v662
    %665 = vmatprep.subr.mxu0 0.0
    %666 = vmatpush1.msra.mxu0 0.0
    %667 = vmatprep.subr.mxu0 0.0
    %668 = vmatpush1.msra.mxu0 0.0
    %669 = vmatprep.subr.mxu0 0.0
    %670 = vmatpush1.msra.mxu0 0.0
    %671 = vmatprep.subr.mxu0 0.0
    %672 = vmatpush1.msra.mxu0 0.0
    %673 = vmatprep.subr.mxu0 0.0
    %674 = vmatpush1.msra.mxu0 0.0
    %675 = vmatprep.subr.mxu0 0.0
    %676 = vmatpush1.msra.mxu0 0.0
    %677 = vmatprep.subr.mxu0 0.0
    %678 = vmatpush1.msra.mxu0 0.0
    %679 = vmatprep.subr.mxu0 0.0
    %680 = vmatpush1.msra.mxu0 0.0
    %681 = vmatprep.subr.mxu0 0.0
    %682 = vmatpush1.msra.mxu0 0.0
    %683 = vmatprep.subr.mxu0 0.0
    %684 = vmatpush1.msra.mxu0 0.0
    %685 = vmatprep.subr.mxu0 0.0
    %686 = vmatpush1.msra.mxu0 0.0
    %687 = vmatprep.subr.mxu0 0.0
    %688 = vmatpush1.msra.mxu0 0.0
    %689 = vmatprep.subr.mxu0 0.0
    %690 = vmatpush1.msra.mxu0 0.0
    %691 = vmatprep.subr.mxu0 0.0
    %692 = vmatpush1.msra.mxu0 0.0
    %693 = vmatprep.subr.mxu0 0.0
    %694 = vmatpush1.msra.mxu0 0.0
    %695 = vmatprep.subr.mxu0 0.0
    %696 = vmatpush1.msra.mxu0 0.0
    %697 = vmatprep.subr.mxu0 0.0
    %698 = vmatpush1.msra.mxu0 0.0
    %699 = vmatprep.subr.mxu0 0.0
    %700 = vmatpush1.msra.mxu0 0.0
    %701 = vmatprep.subr.mxu0 0.0
    %702 = vmatpush1.msra.mxu0 0.0
    %703 = vmatprep.subr.mxu0 0.0
    %704 = vmatpush1.msra.mxu0 0.0
    %705 = vmatprep.subr.mxu0 0.0
    %706 = vmatpush1.msra.mxu0 0.0
    %707 = vmatprep.subr.mxu0 0.0
    %708 = vmatpush1.msra.mxu0 0.0
    %709 = vmatprep.subr.mxu0 0.0
    %710 = vmatpush1.msra.mxu0 0.0
    %711 = vmatprep.subr.mxu0 0.0
    %712 = vmatpush1.msra.mxu0 0.0
    %713 = vmatprep.subr.mxu0 0.0
    %714 = vmatpush1.msra.mxu0 0.0
    %715 = vmatprep.subr.mxu0 0.0
    %716 = vmatpush1.msra.mxu0 0.0
    %717 = vmatprep.subr.mxu0 0.0
    %718 = vmatpush1.msra.mxu0 0.0
    %719 = vmatprep.subr.mxu0 0.0
    %720 = vmatpush1.msra.mxu0 0.0
    %721 = vmatprep.subr.mxu0 0.0
    %722 = vmatpush1.msra.mxu0 0.0
    %723 = vmatprep.subr.mxu0 0.0
    %724 = vmatpush1.msra.mxu0 0.0
    %725 = vmatprep.subr.mxu0 0.0
    %726 = vmatpush1.msra.mxu0 0.0
    %727 = vmatprep.mubr.f32.mxu0 0.0
    %728 = vmatmul.mubr.f32.gmra.mrb[0].mxu0 %v366
    %v729 = vpop.f32.mrb[0].mxu0
    %v730 = vadd.f32 0.0, %v729
    %v731 = vpop.f32.mrb[0].mxu0
    %732 = vmatprep.mubr.f32.mxu0 0.0
    %733 = vmatmul.mubr.f32.gmra.mrb[0].mxu0 %v369
    %v734 = vpop.f32.mrb[0].mxu0
    %v735 = vadd.f32 0.0, %v734
    %v736 = vpop.f32.mrb[0].mxu0
    %737 = vmatprep.mubr.f32.mxu0 0.0
    %738 = vmatmul.mubr.f32.gmra.mrb[0].mxu0 %v372
    %v739 = vpop.f32.mrb[0].mxu0
    %v740 = vadd.f32 0.0, %v739
    %v741 = vpop.f32.mrb[0].mxu0
    %742 = vdwg.mxu0
    %v743 = vsub.f32 %v585, %v730
    %v744 = vsub.f32 %v586, %v735
    %v745 = vsub.f32 %v587, %v740
    %v746 = vadd.f32 %v743, %v570
    %v747 = vadd.f32 %v744, %v571
    %v748 = vadd.f32 %v745, %v572
    %v749 = vmax.f32 %v746, 0.0
    %v750 = vmax.f32 %v747, 0.0
    %v751 = vmax.f32 %v748, 0.0
    %v752 = vadd.f32 %v743, %v573
    %v753 = vadd.f32 %v744, %v574
    %v754 = vadd.f32 %v745, %v575
    %v755 = vmin.f32 %v752, 0.0
    %v756 = vmin.f32 %v753, 0.0
    %v757 = vmin.f32 %v754, 0.0
    %v758 = vadd.f32 %v749, %v755
    %v759 = vadd.f32 %v750, %v756
    %v760 = vadd.f32 %v751, %v757
    %s761 = smul.f32 %s588, 4.0
    %s762 = smul.f32 %s761, %s588
    %s763 = sadd.f32 %s762, 1.0
    %v764 = vstv %s763
    %v765 = vrsqrt.pop %v764
    %v766 = vmul.f32 %v764, %v765
    %vm767 = vcmp.eq.f32.partialorder %v764, inf
    %v768 = vsel %vm767, %v764, %v766
    %vm769 = vcmp.eq.f32.partialorder %v764, 0.0
    %v770 = vand.u32 %v764, 2147483648
    %v771 = vsel %vm769, %v770, %v768
    %s772 = vtos %v771
    %s773 = sadd.f32 %s772, 1.0
    %s774 = smul.f32 %s773, 0.5
    %s775 = ssub.f32 %s588, 1.0
    %v776 = vstv %s774
    %v777 = vrcp.pop %v776
    %s778 = vtos %v777
    %s779 = smul.f32 %s775, %s778
    %v780 = vsub.f32 %v758, %v582
    %v781 = vsub.f32 %v759, %v583
    %v782 = vsub.f32 %v760, %v584
    %v783 = vstv %s779
    %v784 = vmul.f32 %v783, %v780
    %v785 = vmul.f32 %v783, %v781
    %v786 = vmul.f32 %v783, %v782
    %v787 = vadd.f32 %v758, %v784
    %v788 = vadd.f32 %v759, %v785
    %v789 = vadd.f32 %v760, %v786
  $region25: #{mask_dyan_encoder_forward.2} parent=0 // loop_footer
    %s581 = sadd.s32 1, %s577
  $region26: #{mask_dyan_encoder_forward.2} parent=0 // loop_footer_branch
    %576 = sbr.rel target = $region22
  $region27: #{mask_dyan_encoder_forward.2} parent=0 // loop_exit
    _
  %790 = vst [vmem:[%s3] sm:$0xff] %v582
  %791 = vst [vmem:[%s3 + $0x8] sm:$0xff] %v583
  %792 = vst [vmem:[%s3 + $0x10] sm:$0x1] %v584
  %793 = vst [vmem:[%s4] sm:$0x1] %v483
  // Predicated region
  $region28: #{mask_dyan_encoder_forward.2} parent=0 // pred_check
    _
  $region29: #{mask_dyan_encoder_forward.2} parent=0 // pred_check_branch
    %795 = sbr.rel (0) target = $region31
  $region30: #{mask_dyan_encoder_forward.2} parent=0 // pred_region
    _
  $region31: #{mask_dyan_encoder_forward.2} parent=0 // pred_fallthru
    _
  // Predicated region
  $region32: #{mask_dyan_encoder_forward.2} parent=0 // pred_check
    _
  $region33: #{mask_dyan_encoder_forward.2} parent=0 // pred_check_branch
    %797 = sbr.rel (0) target = $region35
  $region34: #{mask_dyan_encoder_forward.2} parent=0 // pred_region
    _
  $region35: #{mask_dyan_encoder_forward.2} parent=0 // pred_fallthru
    _
  // Predicated region
  $region36: #{mask_dyan_encoder_forward.2} parent=0 // pred_check
    _
  $region37: #{mask_dyan_encoder_forward.2} parent=0 // pred_check_branch
    %799 = sbr.rel (0) target = $region39
  $region38: #{mask_dyan_encoder_forward.2} parent=0 // pred_region
    _
  $region39: #{mask_dyan_encoder_forward.2} parent=0 // pred_fallthru
    _
  // Predicated region
  $region40: #{mask_dyan_encoder_forward.2} parent=0 // pred_check
    _
  $region41: #{mask_dyan_encoder_forward.2} parent=0 // pred_check_branch
    %801 = sbr.rel (0) target = $region43
  $region42: #{mask_dyan_encoder_forward.2} parent=0 // pred_region
    _
  $region43: #{mask_dyan_encoder_forward.2} parent=0 // pred_fallthru
    _

</llo_original>
